<compile_context>
chip_gen: v6e
topology: v6e:2x2x1
jax: 0.10.0
libtpu: 0.0.40
codegen_flags: <defaults>
</compile_context>

<pallas_src>
import math
import functools

import jax
import jax.numpy as jnp
from jax.experimental import pallas as pl
from jax.experimental.pallas import tpu as pltpu

_MiB = 1024 * 1024


def _round_up(a, b):
    return (a + b - 1) // b * b


def _pick_tile(total, target, quantum=128):
    """Largest multiple of `quantum` that divides `total` and is <= target.
    Falls back to `total` (untiled axis) if no such divisor exists."""
    best = None
    t = quantum
    limit = min(target, total)
    while t <= limit:
        if total % t == 0:
            best = t
        t += quantum
    return total if best is None else best


def _vmem_need_bytes(tm, th, D, itemsize):
    # Double-buffered BlockSpec tiles + resident f32 accumulator + an estimate of the
    # in-kernel f32 intermediates (h13 tile and gated tile).
    tiles = (
        2 * tm * D        # x tile, 2 buffers
        + 4 * th * D      # fused w13 tile (D, 2*th), 2 buffers
        + 2 * th * D      # w2.T tile (th, D), 2 buffers
        + 2 * tm * D      # output tile, 2 buffers
    )
    return tiles * itemsize + tm * D * 4 + 12 * tm * th


def _ffn_kernel(x_ref, w13_ref, w2_ref, o_ref, acc_ref, *, th):
    # x_ref   : (tm, D)     token tile (compute dtype)
    # w13_ref : (D, 2*th)   fused [w1.T | w3.T] hidden tile (canonical NN layout)
    # w2_ref  : (th, D)     w2.T hidden tile (canonical NN layout)
    # o_ref   : (tm, D)     output tile (resident across the hidden axis)
    # acc_ref : (tm, D)     f32 accumulator scratch
    h = pl.program_id(1)

    x = x_ref[...]
    # Fused up-projection: one (tm, D) x (D, 2*th) MXU call, f32 accumulation.
    h13 = jnp.dot(x, w13_ref[...], preferred_element_type=jnp.float32)
    h1 = h13[:, :th]
    h3 = h13[:, th:]

    # SwiGLU gate in f32 (sigmoid on the EUP, muls on the VPU).
    g = (h1 * jax.nn.sigmoid(h1)) * h3

    # Down-projection partial for this hidden tile: (tm, th) x (th, D) NN GEMM.
    part = jnp.dot(g.astype(x.dtype), w2_ref[...], preferred_element_type=jnp.float32)

    @pl.when(h == 0)
    def _():
        acc_ref[...] = part          # write-first: saves a zero-init + read-modify-write

    @pl.when(h > 0)
    def _():
        acc_ref[...] += part

    @pl.when(h == pl.num_programs(1) - 1)
    def _():
        o_ref[...] = acc_ref[...].astype(o_ref.dtype)


@functools.partial(jax.jit, static_argnames=("tm", "th", "vmem_limit", "compute_dtype"))
def _feed_forward_impl(x, w1, w2, w3, *, tm, th, vmem_limit, compute_dtype):
    B, S, D = x.shape
    H = w1.shape[0]
    M = B * S

    cdt = jnp.dtype(compute_dtype) if compute_dtype is not None else jnp.dtype(x.dtype)
    itemsize = cdt.itemsize

    x2d = x.reshape(M, D).astype(cdt)
    Mp = _round_up(M, tm)
    if Mp != M:
        x2d = jnp.pad(x2d, ((0, Mp - M), (0, 0)))

    nh = H // th
    # One-time canonical [K, N] layout + w1/w3 fusion: hidden tile hb occupies columns
    # [hb*2*th, (hb+1)*2*th) of w13, first th lanes = w1 tile, next th = w3 tile.
    w13 = (
        jnp.concatenate([w1.T.reshape(D, nh, th), w3.T.reshape(D, nh, th)], axis=2)
        .reshape(D, 2 * H)
        .astype(cdt)
    )
    w2t = w2.T.astype(cdt)  # (H, D)

    grid_m = Mp // tm
    cost = pl.CostEstimate(
        flops=6 * M * D * H,                 # three M x D x H matmuls
        transcendentals=M * H,               # sigmoid
        # Weights are re-streamed once per token tile; activations read+written once.
        bytes_accessed=grid_m * 3 * D * H * itemsize + 2 * M * D * itemsize,
    )

    out2d = pl.pallas_call(
        functools.partial(_ffn_kernel, th=th),
        out_shape=jax.ShapeDtypeStruct((Mp, D), x.dtype),
        grid_spec=pltpu.PrefetchScalarGridSpec(
            num_scalar_prefetch=0,
            grid=(grid_m, nh),
            in_specs=[
                pl.BlockSpec((tm, D), lambda i, h: (i, 0)),        # x tile
                pl.BlockSpec((D, 2 * th), lambda i, h: (0, h)),    # fused [w1.T|w3.T]
                pl.BlockSpec((th, D), lambda i, h: (h, 0)),        # w2.T tile
            ],
            out_specs=pl.BlockSpec((tm, D), lambda i, h: (i, 0)),
            scratch_shapes=[pltpu.VMEM((tm, D), jnp.float32)],
        ),
        compiler_params=pltpu.CompilerParams(
            dimension_semantics=("parallel", "arbitrary"),
            vmem_limit_bytes=vmem_limit,
        ),
        cost_estimate=cost,
    )(x2d, w13, w2t)

    return out2d[:M].reshape(B, S, D)


def feed_forward(x, w1, w2, w3, *, compute_dtype=None, tm=None, th=None):
    """SwiGLU FFN.
    x        : [batch, seq, dim]
    w1, w3   : [hidden, dim]   (PyTorch nn.Linear [out_features, in_features])
    w2       : [dim, hidden]
    compute_dtype : optional MXU operand dtype (e.g. jnp.bfloat16); accumulation is f32.
    """
    B, S, D = x.shape
    H = w1.shape[0]
    assert w1.shape == (H, D) and w3.shape == (H, D) and w2.shape == (D, H)
    M = B * S

    cdt = jnp.dtype(compute_dtype) if compute_dtype is not None else jnp.dtype(x.dtype)
    itemsize = cdt.itemsize

    # --- generation-aware VMEM budget & tile targets -------------------------------
    try:
        vmem_cap = int(pltpu.get_tpu_info().vmem_capacity_bytes)
    except Exception:  # pragma: no cover - conservative fallback
        vmem_cap = 64 * _MiB

    if vmem_cap >= 96 * _MiB:
        # 128 MiB class (v5e / v6e): large token tile -> weight streaming amortized,
        # kernel becomes MXU-bound.
        tm_target, th_target = 1024, 512
        budget = min(vmem_cap - 16 * _MiB, 112 * _MiB)
        small_vmem = False
    else:
        # 64 MiB/TC class (v7x) or unknown: smaller token tile, leave headroom.
        tm_target, th_target = 512, 512
        budget = max(vmem_cap - 10 * _MiB, min(vmem_cap, 24 * _MiB))
        small_vmem = True
    usable = budget - 6 * _MiB  # fitting target; rest is compiler-scratch headroom

    # --- tile selection -------------------------------------------------------------
    if th is None:
        th = _pick_tile(H, th_target, 128)
    if tm is None:
        tm = _round_up(min(tm_target, _round_up(M, 16)), 16)
        if small_vmem:
            # On 2-TC parts keep at least two token tiles so both cores get work.
            n_tok_tiles = -(-M // tm)
            if n_tok_tiles < 2 and M >= 512:
                tm = _round_up(-(-M // 2), 16)
        while tm > 16 and _vmem_need_bytes(tm, th, D, itemsize) > usable:
            tm -= 16
    # If a huge model dim still does not fit, shrink the hidden tile too.
    while _vmem_need_bytes(tm, th, D, itemsize) > usable and th > 128:
        new_th = _pick_tile(H, th // 2, 128)
        if new_th >= th:
            break
        th = new_th

    need = _vmem_need_bytes(tm, th, D, itemsize)
    vmem_limit = int(min(budget, max(need * 3 // 2, 32 * _MiB)))
    vmem_limit = int(max(vmem_limit, min(need + 4 * _MiB, vmem_cap)))

    cd_name = None if compute_dtype is None else jnp.dtype(compute_dtype).name
    return _feed_forward_impl(
        x, w1, w2, w3, tm=int(tm), th=int(th), vmem_limit=vmem_limit, compute_dtype=cd_name
    )


def _llama_hidden_dim(dim, multiple_of, ffn_dim_multiplier=None):
    hidden_dim = 4 * dim
    hidden_dim = int(2 * hidden_dim / 3)
    if ffn_dim_multiplier is not None:
        hidden_dim = int(ffn_dim_multiplier * hidden_dim)
    hidden_dim = multiple_of * ((hidden_dim + multiple_of - 1) // multiple_of)
    return hidden_dim


if __name__ == "__main__":
    # Small, module-consistent shapes (dim >= 128 so the output lane dim is dense).
    batch, seq, dim = 2, 8, 256
    multiple_of = 128
    hidden = _llama_hidden_dim(dim, multiple_of)  # 4*256=1024 -> 682 -> 768

    key = jax.random.PRNGKey(0)
    kx, k1, k2, k3 = jax.random.split(key, 4)

    x = jax.random.normal(kx, (batch, seq, dim), dtype=jnp.float32)

    # Deterministic init mimicking nn.Linear's default (uniform +/- 1/sqrt(fan_in)).
    b1 = 1.0 / math.sqrt(dim)
    b2 = 1.0 / math.sqrt(hidden)
    w1 = jax.random.uniform(k1, (hidden, dim), jnp.float32, -b1, b1)   # dim -> hidden
    w3 = jax.random.uniform(k3, (hidden, dim), jnp.float32, -b1, b1)   # dim -> hidden
    w2 = jax.random.uniform(k2, (dim, hidden), jnp.float32, -b2, b2)   # hidden -> dim

    # Pure-JAX reference (intended SwiGLU semantics of the module).
    ref = (jax.nn.silu(x @ w1.T) * (x @ w3.T)) @ w2.T

    # f32 compute path (exact-ish).
    out = jax.block_until_ready(feed_forward(x, w1, w2, w3))
    assert out.shape == (batch, seq, dim)
    assert jnp.allclose(out, ref, atol=1e-4, rtol=1e-4), "f32 mismatch vs reference"

    # bf16 MXU-operand path with f32 accumulation (loose tolerance).
    out_bf16 = jax.block_until_ready(feed_forward(x, w1, w2, w3, compute_dtype=jnp.bfloat16))
    assert out_bf16.shape == (batch, seq, dim)
    assert jnp.allclose(out_bf16, ref, atol=5e-2, rtol=1e-1), "bf16 mismatch vs reference"

    print("KERNEL_OK")
</pallas_src>

<mosaic_0001>
module attributes {stable_mosaic.version = 11 : i64} {
  func.func @_ffn_kernel(%arg0: i32, %arg1: i32, %arg2: memref<16x256xf32, #tpu.memory_space<vmem>>, %arg3: memref<256x768xf32, #tpu.memory_space<vmem>>, %arg4: memref<384x256xf32, #tpu.memory_space<vmem>>, %arg5: memref<16x256xf32, #tpu.memory_space<vmem>>, %arg6: memref<16x256xf32, #tpu.memory_space<vmem>>) attributes {dimension_semantics = [#tpu.dimension_semantics<parallel>, #tpu.dimension_semantics<arbitrary>], iteration_bounds = array<i64: 1, 2>, scalar_prefetch = 0 : i64, scratch_operands = 1 : i64, tpu.core_type = #tpu.core_type<tc>, window_params = [{transform_indices = @transform_0, window_bounds = array<i64: 16, 256>}, {transform_indices = @transform_1, window_bounds = array<i64: 256, 768>}, {transform_indices = @transform_2, window_bounds = array<i64: 384, 256>}, {transform_indices = @transform_3, window_bounds = array<i64: 16, 256>}]} {
    %c0 = arith.constant 0 : index
    %c0_0 = arith.constant 0 : index
    %0 = vector.load %arg2[%c0, %c0_0] : memref<16x256xf32, #tpu.memory_space<vmem>>, vector<16x256xf32>
    %c0_1 = arith.constant 0 : index
    %c0_2 = arith.constant 0 : index
    %1 = vector.load %arg3[%c0_1, %c0_2] : memref<256x768xf32, #tpu.memory_space<vmem>>, vector<256x768xf32>
    %cst = arith.constant dense<0.000000e+00> : vector<16x768xf32>
    %2 = tpu.matmul %0, %1, %cst {dimension_numbers = #tpu.dot_dimension_numbers<[1], [0], [0], [1], [0, 0, 1, 1], [], []>} : vector<16x256xf32>, vector<256x768xf32>, vector<16x768xf32> -> vector<16x768xf32>
    %3 = vector.extract_strided_slice %2 {offsets = [0, 0], sizes = [16, 384], strides = [1, 1]} : vector<16x768xf32> to vector<16x384xf32>
    %4 = vector.extract_strided_slice %2 {offsets = [0, 384], sizes = [16, 384], strides = [1, 1]} : vector<16x768xf32> to vector<16x384xf32>
    %5 = arith.negf %3 : vector<16x384xf32>
    %6 = math.exp %5 : vector<16x384xf32>
    %cst_3 = arith.constant 1.000000e+00 : f32
    %7 = vector.broadcast %cst_3 : f32 to vector<16x384xf32>
    %8 = arith.addf %7, %6 : vector<16x384xf32>
    %9 = arith.divf %7, %8 : vector<16x384xf32>
    %10 = arith.mulf %3, %9 : vector<16x384xf32>
    %11 = arith.mulf %10, %4 : vector<16x384xf32>
    %c0_4 = arith.constant 0 : index
    %c0_5 = arith.constant 0 : index
    %12 = vector.load %arg4[%c0_4, %c0_5] : memref<384x256xf32, #tpu.memory_space<vmem>>, vector<384x256xf32>
    %cst_6 = arith.constant dense<0.000000e+00> : vector<16x256xf32>
    %13 = tpu.matmul %11, %12, %cst_6 {dimension_numbers = #tpu.dot_dimension_numbers<[1], [0], [0], [1], [0, 0, 1, 1], [], []>} : vector<16x384xf32>, vector<384x256xf32>, vector<16x256xf32> -> vector<16x256xf32>
    %c0_i32 = arith.constant 0 : i32
    %14 = arith.cmpi eq, %arg1, %c0_i32 : i32
    %15 = arith.extui %14 : i1 to i32
    %c0_i32_7 = arith.constant 0 : i32
    %16 = arith.cmpi ne, %15, %c0_i32_7 : i32
    scf.if %16 {
      %c0_11 = arith.constant 0 : index
      %c0_12 = arith.constant 0 : index
      %23 = vector.load %arg6[%c0_11, %c0_12] : memref<16x256xf32, #tpu.memory_space<vmem>>, vector<16x256xf32>
      tpu.vector_store %arg6[%c0_11, %c0_12], %13 {strides = array<i32>} : memref<16x256xf32, #tpu.memory_space<vmem>>, vector<16x256xf32>,
    } else {
    }
    %c0_i32_8 = arith.constant 0 : i32
    %17 = arith.cmpi sgt, %arg1, %c0_i32_8 : i32
    %18 = arith.extui %17 : i1 to i32
    %c0_i32_9 = arith.constant 0 : i32
    %19 = arith.cmpi ne, %18, %c0_i32_9 : i32
    scf.if %19 {
      %c0_11 = arith.constant 0 : index
      %c0_12 = arith.constant 0 : index
      %23 = vector.load %arg6[%c0_11, %c0_12] : memref<16x256xf32, #tpu.memory_space<vmem>>, vector<16x256xf32>
      %24 = arith.addf %23, %13 : vector<16x256xf32>
      %c0_13 = arith.constant 0 : index
      %c0_14 = arith.constant 0 : index
      %25 = vector.load %arg6[%c0_13, %c0_14] : memref<16x256xf32, #tpu.memory_space<vmem>>, vector<16x256xf32>
      tpu.vector_store %arg6[%c0_13, %c0_14], %24 {strides = array<i32>} : memref<16x256xf32, #tpu.memory_space<vmem>>, vector<16x256xf32>,
    } else {
    }
    %c1_i32 = arith.constant 1 : i32
    %20 = arith.cmpi eq, %arg1, %c1_i32 : i32
    %21 = arith.extui %20 : i1 to i32
    %c0_i32_10 = arith.constant 0 : i32
    %22 = arith.cmpi ne, %21, %c0_i32_10 : i32
    scf.if %22 {
      %c0_11 = arith.constant 0 : index
      %c0_12 = arith.constant 0 : index
      %23 = vector.load %arg6[%c0_11, %c0_12] : memref<16x256xf32, #tpu.memory_space<vmem>>, vector<16x256xf32>
      %c0_13 = arith.constant 0 : index
      %c0_14 = arith.constant 0 : index
      %24 = vector.load %arg5[%c0_13, %c0_14] : memref<16x256xf32, #tpu.memory_space<vmem>>, vector<16x256xf32>
      tpu.vector_store %arg5[%c0_13, %c0_14], %23 {strides = array<i32>} : memref<16x256xf32, #tpu.memory_space<vmem>>, vector<16x256xf32>,
    } else {
    }
    return
  }
  func.func @transform_0(%arg0: i32, %arg1: i32) -> (i32, i32) {
    %c0_i32 = arith.constant 0 : i32
    %c0_i32_0 = arith.constant 0 : i32
    return %arg0, %c0_i32 : i32, i32
  }
  func.func @transform_1(%arg0: i32, %arg1: i32) -> (i32, i32) {
    %c0_i32 = arith.constant 0 : i32
    %c0_i32_0 = arith.constant 0 : i32
    return %c0_i32, %arg1 : i32, i32
  }
  func.func @transform_2(%arg0: i32, %arg1: i32) -> (i32, i32) {
    %c0_i32 = arith.constant 0 : i32
    %c0_i32_0 = arith.constant 0 : i32
    return %arg1, %c0_i32 : i32, i32
  }
  func.func @transform_3(%arg0: i32, %arg1: i32) -> (i32, i32) {
    %c0_i32 = arith.constant 0 : i32
    %c0_i32_0 = arith.constant 0 : i32
    return %arg0, %c0_i32 : i32, i32
  }
}

</mosaic_0001>

<llo_original>
// kernel: _feed_forward_impl.1
$region0: #{_feed_forward_impl.1}
  #allocation0 [shape = 'u32[]', space=smem, size = 0x4, offset = 0x4, fixed_abs, tag = 'smem constant byte address 0x4 - core index']
  #allocation1 [shape = 'u32[144,128]{1,0:T(1,128)}', space=vmem, size = 0x12000, scoped, tag = 'internal scratch']
  #allocation2 [shape = 'f32[16,256]{1,0:T(8,128)}', space=vmem, size = 0x4000, scoped, tag = 'scratch operand']
  %s0 = inlined_call_operand.vmem [shape: f32[16,256], index: 0, kind: input, shape index: {}]
  %s1 = inlined_call_operand.vmem [shape: f32[256,1536], index: 1, kind: input, shape index: {}]
  %s2 = inlined_call_operand.vmem [shape: f32[768,256], index: 2, kind: input, shape index: {}]
  %s3 = inlined_call_operand.hbm [shape: f32[16,256], index: 3, kind: output, shape index: {}]
  %s4 = sld [smem:[#allocation0]]
  $region80: #{_feed_forward_impl.1} parent=0
    _
  %s6 = ssub.s32 1, %s4
  %s7 = scalar_select 0, %s6, %s4
  $region1: #{_feed_forward_impl.1} parent=0
    #allocation3 [shape = 'u8[1572864]{0}', space=vmem, size = 0x180000, scoped, tag = 'input window, operand 1']
    #allocation4 [shape = 'u8[16384]{0}', space=vmem, size = 0x4000, scoped, tag = 'output window, operand 0, single buffered']
    #allocation5 [shape = 's32[2]{0}', space=sflag, size = 0x8, scoped, tag = 'scoped memory for _feed_forward_impl.1']
    %8 = vsyncpa [#allocation5], 0
    loop: start=0, step=1, limit=4
    $region2: #{_feed_forward_impl.1} parent=1 // loop_pre_header
      _
    $region3: #{_feed_forward_impl.1} parent=1 // loop_header
      %s10 = sphi 0, %s14
      %p11 = scmp.ge.s32.totalorder %s10, 4
      %s17 = sphi 0, %s29
      %s18 = sphi 0, %s25
      %s19 = sphi 0, %s17
      %s20 = sphi 0, %s18
      %s21 = sphi 0, %s19
      %s22 = sphi 0, %s20
      %s32 = sphi 0, %s34
      %s35 = sphi 0, %s32
      %s36 = sphi 0, %s35
      %s52 = sphi 0, %s36
      %s58 = sphi 0, %s60
      %s61 = sphi 0, %s58
      %s62 = sphi 0, %s61
      %s78 = sphi 0, %s62
      %s84 = sphi 0, %s86
      %s87 = sphi 0, %s84
      %s88 = sphi 0, %s87
      %s104 = sphi 0, %s88
      %s110 = sphi 0, %s112
      %s113 = sphi 0, %s110
      %s114 = sphi 0, %s113
      %s130 = sphi 0, %s114
    $region4: #{_feed_forward_impl.1} parent=1 // loop_header_branch
      %13 = sbr.rel (%p11) target = $region8
    $region5: #{_feed_forward_impl.1} parent=1 // loop_body
      %s15 = ssub.s32 %s10, 1
      %s16 = ssub.s32 %s10, 2
      %s23 = sadd.s32 1, %s18
      %p24 = scmp.ge.s32.totalorder %s23, 2
      %s25 = scalar_select %p24, 0, %s23
      %s26 = sadd.s32 1, %s17
      %s27 = scalar_select %p24, %s26, %s17
      %p28 = scmp.ge.s32.totalorder %s27, 1
      %s29 = scalar_select %p28, 0, %s27
      %s30 = ssub.s32 %s17, %s29
      %p31 = scmp.eq.s32.totalorder %s30, 0
      %s33 = sadd.s32 %s32, 1
      %s34 = scalar_select %p31, %s32, %s33
      %p37 = pneg %p31
      %p38 = scmp.eq.s32.totalorder %s10, 1
      %p39 = por %p37, %p38
      %p40 = scmp.ne.s32.totalorder %s32, %s35
      %p41 = scmp.eq.s32.totalorder %s10, 0
      %p42 = por %p40, %p41
      %p43 = scmp.ne.s32.totalorder %s32, %s35
      %p44 = scmp.eq.s32.totalorder %s15, 1
      %p45 = por %p43, %p44
      %p46 = scmp.ne.s32.totalorder %s35, %s36
      %p47 = scmp.eq.s32.totalorder %s15, 0
      %p48 = por %p46, %p47
      %p49 = scmp.ne.s32.totalorder %s35, %s36
      %p50 = scmp.eq.s32.totalorder %s16, 1
      %p51 = por %p49, %p50
      %p53 = scmp.ne.s32.totalorder %s36, %s52
      %p54 = scmp.eq.s32.totalorder %s16, 0
      %p55 = por %p53, %p54
      %s56 = ssub.s32 %s18, %s25
      %p57 = scmp.eq.s32.totalorder %s56, 0
      %s59 = sadd.s32 %s58, 1
      %s60 = scalar_select %p57, %s58, %s59
      %p63 = pneg %p57
      %p64 = scmp.eq.s32.totalorder %s10, 1
      %p65 = por %p63, %p64
      %p66 = scmp.ne.s32.totalorder %s58, %s61
      %p67 = scmp.eq.s32.totalorder %s10, 0
      %p68 = por %p66, %p67
      %p69 = scmp.ne.s32.totalorder %s58, %s61
      %p70 = scmp.eq.s32.totalorder %s15, 1
      %p71 = por %p69, %p70
      %p72 = scmp.ne.s32.totalorder %s61, %s62
      %p73 = scmp.eq.s32.totalorder %s15, 0
      %p74 = por %p72, %p73
      %p75 = scmp.ne.s32.totalorder %s61, %s62
      %p76 = scmp.eq.s32.totalorder %s16, 1
      %p77 = por %p75, %p76
      %p79 = scmp.ne.s32.totalorder %s62, %s78
      %p80 = scmp.eq.s32.totalorder %s16, 0
      %p81 = por %p79, %p80
      %s82 = ssub.s32 %s18, %s25
      %p83 = scmp.eq.s32.totalorder %s82, 0
      %s85 = sadd.s32 %s84, 1
      %s86 = scalar_select %p83, %s84, %s85
      %p89 = pneg %p83
      %p90 = scmp.eq.s32.totalorder %s10, 1
      %p91 = por %p89, %p90
      %p92 = scmp.ne.s32.totalorder %s84, %s87
      %p93 = scmp.eq.s32.totalorder %s10, 0
      %p94 = por %p92, %p93
      %p95 = scmp.ne.s32.totalorder %s84, %s87
      %p96 = scmp.eq.s32.totalorder %s15, 1
      %p97 = por %p95, %p96
      %p98 = scmp.ne.s32.totalorder %s87, %s88
      %p99 = scmp.eq.s32.totalorder %s15, 0
      %p100 = por %p98, %p99
      %p101 = scmp.ne.s32.totalorder %s87, %s88
      %p102 = scmp.eq.s32.totalorder %s16, 1
      %p103 = por %p101, %p102
      %p105 = scmp.ne.s32.totalorder %s88, %s104
      %p106 = scmp.eq.s32.totalorder %s16, 0
      %p107 = por %p105, %p106
      %s108 = ssub.s32 %s17, %s29
      %p109 = scmp.eq.s32.totalorder %s108, 0
      %s111 = sadd.s32 %s110, 1
      %s112 = scalar_select %p109, %s110, %s111
      %p115 = pneg %p109
      %p116 = scmp.eq.s32.totalorder %s10, 1
      %p117 = por %p115, %p116
      %p118 = scmp.ne.s32.totalorder %s110, %s113
      %p119 = scmp.eq.s32.totalorder %s10, 0
      %p120 = por %p118, %p119
      %p121 = scmp.ne.s32.totalorder %s110, %s113
      %p122 = scmp.eq.s32.totalorder %s15, 1
      %p123 = por %p121, %p122
      %p124 = scmp.ne.s32.totalorder %s113, %s114
      %p125 = scmp.eq.s32.totalorder %s15, 0
      %p126 = por %p124, %p125
      %p127 = scmp.ne.s32.totalorder %s113, %s114
      %p128 = scmp.eq.s32.totalorder %s16, 1
      %p129 = por %p127, %p128
      %p131 = scmp.ne.s32.totalorder %s114, %s130
      %p132 = scmp.eq.s32.totalorder %s16, 0
      %p133 = por %p131, %p132
      %p134 = scmp.le.s32.totalorder 1, %s10
      %p135 = scmp.lt.s32.totalorder %s10, 3
      %p136 = pnand %p134, %p135
      %p137 = pneg %p136
      // Predicated region
      $region9: #{_feed_forward_impl.1} parent=5 // pred_check
        _
      $region10: #{_feed_forward_impl.1} parent=5 // pred_check_branch
        %139 = sbr.rel (%p136) target = $region12
      $region11: #{_feed_forward_impl.1} parent=5 // pred_region
        %s140 = ssub.s32 %s10, 1
        // Predicated region
        $region13: #{_feed_forward_impl.1} parent=11 // pred_check
          %p141 = pneg %p48
        $region14: #{_feed_forward_impl.1} parent=11 // pred_check_branch
          %143 = sbr.rel (%p141) target = $region16
        $region15: #{_feed_forward_impl.1} parent=11 // pred_region
          %s144 = smul.u32 2, %s19
          %p145 = scmp.lt.s32.totalorder %s144, 1
          %s146 = scalar_select %p145, %s144, 1
          %s147 = smul.addr %s146, 2
          %s148 = smul.addr %s147, 8
          %s149 = scalar_lea.vmem %s0, %s148
          %s150 = smul.u32 2, %s19
        $region16: #{_feed_forward_impl.1} parent=11 // pred_fallthru
          _
      $region12: #{_feed_forward_impl.1} parent=5 // pred_fallthru
        _
      %p151 = scmp.lt.s32.totalorder %s10, 2
      // Predicated region
      $region17: #{_feed_forward_impl.1} parent=5 // pred_check
        %p152 = pneg %p151
      $region18: #{_feed_forward_impl.1} parent=5 // pred_check_branch
        %154 = sbr.rel (%p152) target = $region20
      $region19: #{_feed_forward_impl.1} parent=5 // pred_region
        // Predicated region
        $region21: #{_feed_forward_impl.1} parent=19 // pred_check
          %p155 = pneg %p68
        $region22: #{_feed_forward_impl.1} parent=19 // pred_check_branch
          %157 = sbr.rel (%p155) target = $region24
        $region23: #{_feed_forward_impl.1} parent=19 // pred_region
          %s158 = sand.u32 %s58, 1
          %s159 = sand.u32 %s58, 1
          %s160 = smul.addr %s159, 1536
          %s161 = scalar_lea.vmem [#allocation3], %s160
          %s162 = smul.u32 6, %s18
          %s163 = smul.addr %s162, 8
          %s164 = scalar_lea.vmem %s1, %s163
          // Predicated region
          $region25: #{_feed_forward_impl.1} parent=23 // pred_check
            _
          $region26: #{_feed_forward_impl.1} parent=23 // pred_check_branch
            %166 = sbr.rel (0) target = $region28
          $region27: #{_feed_forward_impl.1} parent=23 // pred_region
            // Predicated region
            $region29: #{_feed_forward_impl.1} parent=27 // pred_check
              _
            $region30: #{_feed_forward_impl.1} parent=27 // pred_check_branch
              %168 = sbr.rel (0) target = $region32
            $region31: #{_feed_forward_impl.1} parent=27 // pred_region
              loop: start=0, step=1, limit=1
              $region33: #{_feed_forward_impl.1} parent=31 // loop_pre_header
                _
              $region34: #{_feed_forward_impl.1} parent=31 // loop_header
                %s170 = sphi 0, %s174
                %p171 = scmp.ge.s32.totalorder %s170, 1
                %s175 = sphi %s164, %s164
                %s176 = sphi %s161, %s161
              $region35: #{_feed_forward_impl.1} parent=31 // loop_header_branch
                %173 = sbr.rel (%p171) target = $region39
              $region36: #{_feed_forward_impl.1} parent=31 // loop_body
                %v177 = vld [vmem:[%s175] sm:$0xff]
                %178 = vst [vmem:[%s176] sm:$0xff] %v177
                %v179 = vld [vmem:[%s175 + $0x8] sm:$0xff]
                %180 = vst [vmem:[%s176 + $0x8] sm:$0xff] %v179
                %v181 = vld [vmem:[%s175 + $0x10] sm:$0xff]
                %182 = vst [vmem:[%s176 + $0x10] sm:$0xff] %v181
                %v183 = vld [vmem:[%s175 + $0x18] sm:$0xff]
                %184 = vst [vmem:[%s176 + $0x18] sm:$0xff] %v183
                %v185 = vld [vmem:[%s175 + $0x20] sm:$0xff]
                %186 = vst [vmem:[%s176 + $0x20] sm:$0xff] %v185
                %v187 = vld [vmem:[%s175 + $0x28] sm:$0xff]
                %188 = vst [vmem:[%s176 + $0x28] sm:$0xff] %v187
                %v189 = vld [vmem:[%s175 + $0x60] sm:$0xff]
                %190 = vst [vmem:[%s176 + $0x30] sm:$0xff] %v189
                %v191 = vld [vmem:[%s175 + $0x68] sm:$0xff]
                %192 = vst [vmem:[%s176 + $0x38] sm:$0xff] %v191
                %v193 = vld [vmem:[%s175 + $0x70] sm:$0xff]
                %194 = vst [vmem:[%s176 + $0x40] sm:$0xff] %v193
                %v195 = vld [vmem:[%s175 + $0x78] sm:$0xff]
                %196 = vst [vmem:[%s176 + $0x48] sm:$0xff] %v195
                %v197 = vld [vmem:[%s175 + $0x80] sm:$0xff]
                %198 = vst [vmem:[%s176 + $0x50] sm:$0xff] %v197
                %v199 = vld [vmem:[%s175 + $0x88] sm:$0xff]
                %200 = vst [vmem:[%s176 + $0x58] sm:$0xff] %v199
                %v201 = vld [vmem:[%s175 + $0xc0] sm:$0xff]
                %202 = vst [vmem:[%s176 + $0x60] sm:$0xff] %v201
                %v203 = vld [vmem:[%s175 + $0xc8] sm:$0xff]
                %204 = vst [vmem:[%s176 + $0x68] sm:$0xff] %v203
                %v205 = vld [vmem:[%s175 + $0xd0] sm:$0xff]
                %206 = vst [vmem:[%s176 + $0x70] sm:$0xff] %v205
                %v207 = vld [vmem:[%s175 + $0xd8] sm:$0xff]
                %208 = vst [vmem:[%s176 + $0x78] sm:$0xff] %v207
                %v209 = vld [vmem:[%s175 + $0xe0] sm:$0xff]
                %210 = vst [vmem:[%s176 + $0x80] sm:$0xff] %v209
                %v211 = vld [vmem:[%s175 + $0xe8] sm:$0xff]
                %212 = vst [vmem:[%s176 + $0x88] sm:$0xff] %v211
                %v213 = vld [vmem:[%s175 + $0x120] sm:$0xff]
                %214 = vst [vmem:[%s176 + $0x90] sm:$0xff] %v213
                %v215 = vld [vmem:[%s175 + $0x128] sm:$0xff]
                %216 = vst [vmem:[%s176 + $0x98] sm:$0xff] %v215
                %v217 = vld [vmem:[%s175 + $0x130] sm:$0xff]
                %218 = vst [vmem:[%s176 + $0xa0] sm:$0xff] %v217
                %v219 = vld [vmem:[%s175 + $0x138] sm:$0xff]
                %220 = vst [vmem:[%s176 + $0xa8] sm:$0xff] %v219
                %v221 = vld [vmem:[%s175 + $0x140] sm:$0xff]
                %222 = vst [vmem:[%s176 + $0xb0] sm:$0xff] %v221
                %v223 = vld [vmem:[%s175 + $0x148] sm:$0xff]
                %224 = vst [vmem:[%s176 + $0xb8] sm:$0xff] %v223
                %v225 = vld [vmem:[%s175 + $0x180] sm:$0xff]
                %226 = vst [vmem:[%s176 + $0xc0] sm:$0xff] %v225
                %v227 = vld [vmem:[%s175 + $0x188] sm:$0xff]
                %228 = vst [vmem:[%s176 + $0xc8] sm:$0xff] %v227
                %v229 = vld [vmem:[%s175 + $0x190] sm:$0xff]
                %230 = vst [vmem:[%s176 + $0xd0] sm:$0xff] %v229
                %v231 = vld [vmem:[%s175 + $0x198] sm:$0xff]
                %232 = vst [vmem:[%s176 + $0xd8] sm:$0xff] %v231
                %v233 = vld [vmem:[%s175 + $0x1a0] sm:$0xff]
                %234 = vst [vmem:[%s176 + $0xe0] sm:$0xff] %v233
                %v235 = vld [vmem:[%s175 + $0x1a8] sm:$0xff]
                %236 = vst [vmem:[%s176 + $0xe8] sm:$0xff] %v235
                %v237 = vld [vmem:[%s175 + $0x1e0] sm:$0xff]
                %238 = vst [vmem:[%s176 + $0xf0] sm:$0xff] %v237
                %v239 = vld [vmem:[%s175 + $0x1e8] sm:$0xff]
                %240 = vst [vmem:[%s176 + $0xf8] sm:$0xff] %v239
                %v241 = vld [vmem:[%s175 + $0x1f0] sm:$0xff]
                %242 = vst [vmem:[%s176 + $0x100] sm:$0xff] %v241
                %v243 = vld [vmem:[%s175 + $0x1f8] sm:$0xff]
                %244 = vst [vmem:[%s176 + $0x108] sm:$0xff] %v243
                %v245 = vld [vmem:[%s175 + $0x200] sm:$0xff]
                %246 = vst [vmem:[%s176 + $0x110] sm:$0xff] %v245
                %v247 = vld [vmem:[%s175 + $0x208] sm:$0xff]
                %248 = vst [vmem:[%s176 + $0x118] sm:$0xff] %v247
                %v249 = vld [vmem:[%s175 + $0x240] sm:$0xff]
                %250 = vst [vmem:[%s176 + $0x120] sm:$0xff] %v249
                %v251 = vld [vmem:[%s175 + $0x248] sm:$0xff]
                %252 = vst [vmem:[%s176 + $0x128] sm:$0xff] %v251
                %v253 = vld [vmem:[%s175 + $0x250] sm:$0xff]
                %254 = vst [vmem:[%s176 + $0x130] sm:$0xff] %v253
                %v255 = vld [vmem:[%s175 + $0x258] sm:$0xff]
                %256 = vst [vmem:[%s176 + $0x138] sm:$0xff] %v255
                %v257 = vld [vmem:[%s175 + $0x260] sm:$0xff]
                %258 = vst [vmem:[%s176 + $0x140] sm:$0xff] %v257
                %v259 = vld [vmem:[%s175 + $0x268] sm:$0xff]
                %260 = vst [vmem:[%s176 + $0x148] sm:$0xff] %v259
                %v261 = vld [vmem:[%s175 + $0x2a0] sm:$0xff]
                %262 = vst [vmem:[%s176 + $0x150] sm:$0xff] %v261
                %v263 = vld [vmem:[%s175 + $0x2a8] sm:$0xff]
                %264 = vst [vmem:[%s176 + $0x158] sm:$0xff] %v263
                %v265 = vld [vmem:[%s175 + $0x2b0] sm:$0xff]
                %266 = vst [vmem:[%s176 + $0x160] sm:$0xff] %v265
                %v267 = vld [vmem:[%s175 + $0x2b8] sm:$0xff]
                %268 = vst [vmem:[%s176 + $0x168] sm:$0xff] %v267
                %v269 = vld [vmem:[%s175 + $0x2c0] sm:$0xff]
                %270 = vst [vmem:[%s176 + $0x170] sm:$0xff] %v269
                %v271 = vld [vmem:[%s175 + $0x2c8] sm:$0xff]
                %272 = vst [vmem:[%s176 + $0x178] sm:$0xff] %v271
                %v273 = vld [vmem:[%s175 + $0x300] sm:$0xff]
                %274 = vst [vmem:[%s176 + $0x180] sm:$0xff] %v273
                %v275 = vld [vmem:[%s175 + $0x308] sm:$0xff]
                %276 = vst [vmem:[%s176 + $0x188] sm:$0xff] %v275
                %v277 = vld [vmem:[%s175 + $0x310] sm:$0xff]
                %278 = vst [vmem:[%s176 + $0x190] sm:$0xff] %v277
                %v279 = vld [vmem:[%s175 + $0x318] sm:$0xff]
                %280 = vst [vmem:[%s176 + $0x198] sm:$0xff] %v279
                %v281 = vld [vmem:[%s175 + $0x320] sm:$0xff]
                %282 = vst [vmem:[%s176 + $0x1a0] sm:$0xff] %v281
                %v283 = vld [vmem:[%s175 + $0x328] sm:$0xff]
                %284 = vst [vmem:[%s176 + $0x1a8] sm:$0xff] %v283
                %v285 = vld [vmem:[%s175 + $0x360] sm:$0xff]
                %286 = vst [vmem:[%s176 + $0x1b0] sm:$0xff] %v285
                %v287 = vld [vmem:[%s175 + $0x368] sm:$0xff]
                %288 = vst [vmem:[%s176 + $0x1b8] sm:$0xff] %v287
                %v289 = vld [vmem:[%s175 + $0x370] sm:$0xff]
                %290 = vst [vmem:[%s176 + $0x1c0] sm:$0xff] %v289
                %v291 = vld [vmem:[%s175 + $0x378] sm:$0xff]
                %292 = vst [vmem:[%s176 + $0x1c8] sm:$0xff] %v291
                %v293 = vld [vmem:[%s175 + $0x380] sm:$0xff]
                %294 = vst [vmem:[%s176 + $0x1d0] sm:$0xff] %v293
                %v295 = vld [vmem:[%s175 + $0x388] sm:$0xff]
                %296 = vst [vmem:[%s176 + $0x1d8] sm:$0xff] %v295
                %v297 = vld [vmem:[%s175 + $0x3c0] sm:$0xff]
                %298 = vst [vmem:[%s176 + $0x1e0] sm:$0xff] %v297
                %v299 = vld [vmem:[%s175 + $0x3c8] sm:$0xff]
                %300 = vst [vmem:[%s176 + $0x1e8] sm:$0xff] %v299
                %v301 = vld [vmem:[%s175 + $0x3d0] sm:$0xff]
                %302 = vst [vmem:[%s176 + $0x1f0] sm:$0xff] %v301
                %v303 = vld [vmem:[%s175 + $0x3d8] sm:$0xff]
                %304 = vst [vmem:[%s176 + $0x1f8] sm:$0xff] %v303
                %v305 = vld [vmem:[%s175 + $0x3e0] sm:$0xff]
                %306 = vst [vmem:[%s176 + $0x200] sm:$0xff] %v305
                %v307 = vld [vmem:[%s175 + $0x3e8] sm:$0xff]
                %308 = vst [vmem:[%s176 + $0x208] sm:$0xff] %v307
                %v309 = vld [vmem:[%s175 + $0x420] sm:$0xff]
                %310 = vst [vmem:[%s176 + $0x210] sm:$0xff] %v309
                %v311 = vld [vmem:[%s175 + $0x428] sm:$0xff]
                %312 = vst [vmem:[%s176 + $0x218] sm:$0xff] %v311
                %v313 = vld [vmem:[%s175 + $0x430] sm:$0xff]
                %314 = vst [vmem:[%s176 + $0x220] sm:$0xff] %v313
                %v315 = vld [vmem:[%s175 + $0x438] sm:$0xff]
                %316 = vst [vmem:[%s176 + $0x228] sm:$0xff] %v315
                %v317 = vld [vmem:[%s175 + $0x440] sm:$0xff]
                %318 = vst [vmem:[%s176 + $0x230] sm:$0xff] %v317
                %v319 = vld [vmem:[%s175 + $0x448] sm:$0xff]
                %320 = vst [vmem:[%s176 + $0x238] sm:$0xff] %v319
                %v321 = vld [vmem:[%s175 + $0x480] sm:$0xff]
                %322 = vst [vmem:[%s176 + $0x240] sm:$0xff] %v321
                %v323 = vld [vmem:[%s175 + $0x488] sm:$0xff]
                %324 = vst [vmem:[%s176 + $0x248] sm:$0xff] %v323
                %v325 = vld [vmem:[%s175 + $0x490] sm:$0xff]
                %326 = vst [vmem:[%s176 + $0x250] sm:$0xff] %v325
                %v327 = vld [vmem:[%s175 + $0x498] sm:$0xff]
                %328 = vst [vmem:[%s176 + $0x258] sm:$0xff] %v327
                %v329 = vld [vmem:[%s175 + $0x4a0] sm:$0xff]
                %330 = vst [vmem:[%s176 + $0x260] sm:$0xff] %v329
                %v331 = vld [vmem:[%s175 + $0x4a8] sm:$0xff]
                %332 = vst [vmem:[%s176 + $0x268] sm:$0xff] %v331
                %v333 = vld [vmem:[%s175 + $0x4e0] sm:$0xff]
                %334 = vst [vmem:[%s176 + $0x270] sm:$0xff] %v333
                %v335 = vld [vmem:[%s175 + $0x4e8] sm:$0xff]
                %336 = vst [vmem:[%s176 + $0x278] sm:$0xff] %v335
                %v337 = vld [vmem:[%s175 + $0x4f0] sm:$0xff]
                %338 = vst [vmem:[%s176 + $0x280] sm:$0xff] %v337
                %v339 = vld [vmem:[%s175 + $0x4f8] sm:$0xff]
                %340 = vst [vmem:[%s176 + $0x288] sm:$0xff] %v339
                %v341 = vld [vmem:[%s175 + $0x500] sm:$0xff]
                %342 = vst [vmem:[%s176 + $0x290] sm:$0xff] %v341
                %v343 = vld [vmem:[%s175 + $0x508] sm:$0xff]
                %344 = vst [vmem:[%s176 + $0x298] sm:$0xff] %v343
                %v345 = vld [vmem:[%s175 + $0x540] sm:$0xff]
                %346 = vst [vmem:[%s176 + $0x2a0] sm:$0xff] %v345
                %v347 = vld [vmem:[%s175 + $0x548] sm:$0xff]
                %348 = vst [vmem:[%s176 + $0x2a8] sm:$0xff] %v347
                %v349 = vld [vmem:[%s175 + $0x550] sm:$0xff]
                %350 = vst [vmem:[%s176 + $0x2b0] sm:$0xff] %v349
                %v351 = vld [vmem:[%s175 + $0x558] sm:$0xff]
                %352 = vst [vmem:[%s176 + $0x2b8] sm:$0xff] %v351
                %v353 = vld [vmem:[%s175 + $0x560] sm:$0xff]
                %354 = vst [vmem:[%s176 + $0x2c0] sm:$0xff] %v353
                %v355 = vld [vmem:[%s175 + $0x568] sm:$0xff]
                %356 = vst [vmem:[%s176 + $0x2c8] sm:$0xff] %v355
                %v357 = vld [vmem:[%s175 + $0x5a0] sm:$0xff]
                %358 = vst [vmem:[%s176 + $0x2d0] sm:$0xff] %v357
                %v359 = vld [vmem:[%s175 + $0x5a8] sm:$0xff]
                %360 = vst [vmem:[%s176 + $0x2d8] sm:$0xff] %v359
                %v361 = vld [vmem:[%s175 + $0x5b0] sm:$0xff]
                %362 = vst [vmem:[%s176 + $0x2e0] sm:$0xff] %v361
                %v363 = vld [vmem:[%s175 + $0x5b8] sm:$0xff]
                %364 = vst [vmem:[%s176 + $0x2e8] sm:$0xff] %v363
                %v365 = vld [vmem:[%s175 + $0x5c0] sm:$0xff]
                %366 = vst [vmem:[%s176 + $0x2f0] sm:$0xff] %v365
                %v367 = vld [vmem:[%s175 + $0x5c8] sm:$0xff]
                %368 = vst [vmem:[%s176 + $0x2f8] sm:$0xff] %v367
                %v369 = vld [vmem:[%s175 + $0x600] sm:$0xff]
                %370 = vst [vmem:[%s176 + $0x300] sm:$0xff] %v369
                %v371 = vld [vmem:[%s175 + $0x608] sm:$0xff]
                %372 = vst [vmem:[%s176 + $0x308] sm:$0xff] %v371
                %v373 = vld [vmem:[%s175 + $0x610] sm:$0xff]
                %374 = vst [vmem:[%s176 + $0x310] sm:$0xff] %v373
                %v375 = vld [vmem:[%s175 + $0x618] sm:$0xff]
                %376 = vst [vmem:[%s176 + $0x318] sm:$0xff] %v375
                %v377 = vld [vmem:[%s175 + $0x620] sm:$0xff]
                %378 = vst [vmem:[%s176 + $0x320] sm:$0xff] %v377
                %v379 = vld [vmem:[%s175 + $0x628] sm:$0xff]
                %380 = vst [vmem:[%s176 + $0x328] sm:$0xff] %v379
                %v381 = vld [vmem:[%s175 + $0x660] sm:$0xff]
                %382 = vst [vmem:[%s176 + $0x330] sm:$0xff] %v381
                %v383 = vld [vmem:[%s175 + $0x668] sm:$0xff]
                %384 = vst [vmem:[%s176 + $0x338] sm:$0xff] %v383
                %v385 = vld [vmem:[%s175 + $0x670] sm:$0xff]
                %386 = vst [vmem:[%s176 + $0x340] sm:$0xff] %v385
                %v387 = vld [vmem:[%s175 + $0x678] sm:$0xff]
                %388 = vst [vmem:[%s176 + $0x348] sm:$0xff] %v387
                %v389 = vld [vmem:[%s175 + $0x680] sm:$0xff]
                %390 = vst [vmem:[%s176 + $0x350] sm:$0xff] %v389
                %v391 = vld [vmem:[%s175 + $0x688] sm:$0xff]
                %392 = vst [vmem:[%s176 + $0x358] sm:$0xff] %v391
                %v393 = vld [vmem:[%s175 + $0x6c0] sm:$0xff]
                %394 = vst [vmem:[%s176 + $0x360] sm:$0xff] %v393
                %v395 = vld [vmem:[%s175 + $0x6c8] sm:$0xff]
                %396 = vst [vmem:[%s176 + $0x368] sm:$0xff] %v395
                %v397 = vld [vmem:[%s175 + $0x6d0] sm:$0xff]
                %398 = vst [vmem:[%s176 + $0x370] sm:$0xff] %v397
                %v399 = vld [vmem:[%s175 + $0x6d8] sm:$0xff]
                %400 = vst [vmem:[%s176 + $0x378] sm:$0xff] %v399
                %v401 = vld [vmem:[%s175 + $0x6e0] sm:$0xff]
                %402 = vst [vmem:[%s176 + $0x380] sm:$0xff] %v401
                %v403 = vld [vmem:[%s175 + $0x6e8] sm:$0xff]
                %404 = vst [vmem:[%s176 + $0x388] sm:$0xff] %v403
                %v405 = vld [vmem:[%s175 + $0x720] sm:$0xff]
                %406 = vst [vmem:[%s176 + $0x390] sm:$0xff] %v405
                %v407 = vld [vmem:[%s175 + $0x728] sm:$0xff]
                %408 = vst [vmem:[%s176 + $0x398] sm:$0xff] %v407
                %v409 = vld [vmem:[%s175 + $0x730] sm:$0xff]
                %410 = vst [vmem:[%s176 + $0x3a0] sm:$0xff] %v409
                %v411 = vld [vmem:[%s175 + $0x738] sm:$0xff]
                %412 = vst [vmem:[%s176 + $0x3a8] sm:$0xff] %v411
                %v413 = vld [vmem:[%s175 + $0x740] sm:$0xff]
                %414 = vst [vmem:[%s176 + $0x3b0] sm:$0xff] %v413
                %v415 = vld [vmem:[%s175 + $0x748] sm:$0xff]
                %416 = vst [vmem:[%s176 + $0x3b8] sm:$0xff] %v415
                %v417 = vld [vmem:[%s175 + $0x780] sm:$0xff]
                %418 = vst [vmem:[%s176 + $0x3c0] sm:$0xff] %v417
                %v419 = vld [vmem:[%s175 + $0x788] sm:$0xff]
                %420 = vst [vmem:[%s176 + $0x3c8] sm:$0xff] %v419
                %v421 = vld [vmem:[%s175 + $0x790] sm:$0xff]
                %422 = vst [vmem:[%s176 + $0x3d0] sm:$0xff] %v421
                %v423 = vld [vmem:[%s175 + $0x798] sm:$0xff]
                %424 = vst [vmem:[%s176 + $0x3d8] sm:$0xff] %v423
                %v425 = vld [vmem:[%s175 + $0x7a0] sm:$0xff]
                %426 = vst [vmem:[%s176 + $0x3e0] sm:$0xff] %v425
                %v427 = vld [vmem:[%s175 + $0x7a8] sm:$0xff]
                %428 = vst [vmem:[%s176 + $0x3e8] sm:$0xff] %v427
                %v429 = vld [vmem:[%s175 + $0x7e0] sm:$0xff]
                %430 = vst [vmem:[%s176 + $0x3f0] sm:$0xff] %v429
                %v431 = vld [vmem:[%s175 + $0x7e8] sm:$0xff]
                %432 = vst [vmem:[%s176 + $0x3f8] sm:$0xff] %v431
                %v433 = vld [vmem:[%s175 + $0x7f0] sm:$0xff]
                %434 = vst [vmem:[%s176 + $0x400] sm:$0xff] %v433
                %v435 = vld [vmem:[%s175 + $0x7f8] sm:$0xff]
                %436 = vst [vmem:[%s176 + $0x408] sm:$0xff] %v435
                %v437 = vld [vmem:[%s175 + $0x800] sm:$0xff]
                %438 = vst [vmem:[%s176 + $0x410] sm:$0xff] %v437
                %v439 = vld [vmem:[%s175 + $0x808] sm:$0xff]
                %440 = vst [vmem:[%s176 + $0x418] sm:$0xff] %v439
                %v441 = vld [vmem:[%s175 + $0x840] sm:$0xff]
                %442 = vst [vmem:[%s176 + $0x420] sm:$0xff] %v441
                %v443 = vld [vmem:[%s175 + $0x848] sm:$0xff]
                %444 = vst [vmem:[%s176 + $0x428] sm:$0xff] %v443
                %v445 = vld [vmem:[%s175 + $0x850] sm:$0xff]
                %446 = vst [vmem:[%s176 + $0x430] sm:$0xff] %v445
                %v447 = vld [vmem:[%s175 + $0x858] sm:$0xff]
                %448 = vst [vmem:[%s176 + $0x438] sm:$0xff] %v447
                %v449 = vld [vmem:[%s175 + $0x860] sm:$0xff]
                %450 = vst [vmem:[%s176 + $0x440] sm:$0xff] %v449
                %v451 = vld [vmem:[%s175 + $0x868] sm:$0xff]
                %452 = vst [vmem:[%s176 + $0x448] sm:$0xff] %v451
                %v453 = vld [vmem:[%s175 + $0x8a0] sm:$0xff]
                %454 = vst [vmem:[%s176 + $0x450] sm:$0xff] %v453
                %v455 = vld [vmem:[%s175 + $0x8a8] sm:$0xff]
                %456 = vst [vmem:[%s176 + $0x458] sm:$0xff] %v455
                %v457 = vld [vmem:[%s175 + $0x8b0] sm:$0xff]
                %458 = vst [vmem:[%s176 + $0x460] sm:$0xff] %v457
                %v459 = vld [vmem:[%s175 + $0x8b8] sm:$0xff]
                %460 = vst [vmem:[%s176 + $0x468] sm:$0xff] %v459
                %v461 = vld [vmem:[%s175 + $0x8c0] sm:$0xff]
                %462 = vst [vmem:[%s176 + $0x470] sm:$0xff] %v461
                %v463 = vld [vmem:[%s175 + $0x8c8] sm:$0xff]
                %464 = vst [vmem:[%s176 + $0x478] sm:$0xff] %v463
                %v465 = vld [vmem:[%s175 + $0x900] sm:$0xff]
                %466 = vst [vmem:[%s176 + $0x480] sm:$0xff] %v465
                %v467 = vld [vmem:[%s175 + $0x908] sm:$0xff]
                %468 = vst [vmem:[%s176 + $0x488] sm:$0xff] %v467
                %v469 = vld [vmem:[%s175 + $0x910] sm:$0xff]
                %470 = vst [vmem:[%s176 + $0x490] sm:$0xff] %v469
                %v471 = vld [vmem:[%s175 + $0x918] sm:$0xff]
                %472 = vst [vmem:[%s176 + $0x498] sm:$0xff] %v471
                %v473 = vld [vmem:[%s175 + $0x920] sm:$0xff]
                %474 = vst [vmem:[%s176 + $0x4a0] sm:$0xff] %v473
                %v475 = vld [vmem:[%s175 + $0x928] sm:$0xff]
                %476 = vst [vmem:[%s176 + $0x4a8] sm:$0xff] %v475
                %v477 = vld [vmem:[%s175 + $0x960] sm:$0xff]
                %478 = vst [vmem:[%s176 + $0x4b0] sm:$0xff] %v477
                %v479 = vld [vmem:[%s175 + $0x968] sm:$0xff]
                %480 = vst [vmem:[%s176 + $0x4b8] sm:$0xff] %v479
                %v481 = vld [vmem:[%s175 + $0x970] sm:$0xff]
                %482 = vst [vmem:[%s176 + $0x4c0] sm:$0xff] %v481
                %v483 = vld [vmem:[%s175 + $0x978] sm:$0xff]
                %484 = vst [vmem:[%s176 + $0x4c8] sm:$0xff] %v483
                %v485 = vld [vmem:[%s175 + $0x980] sm:$0xff]
                %486 = vst [vmem:[%s176 + $0x4d0] sm:$0xff] %v485
                %v487 = vld [vmem:[%s175 + $0x988] sm:$0xff]
                %488 = vst [vmem:[%s176 + $0x4d8] sm:$0xff] %v487
                %v489 = vld [vmem:[%s175 + $0x9c0] sm:$0xff]
                %490 = vst [vmem:[%s176 + $0x4e0] sm:$0xff] %v489
                %v491 = vld [vmem:[%s175 + $0x9c8] sm:$0xff]
                %492 = vst [vmem:[%s176 + $0x4e8] sm:$0xff] %v491
                %v493 = vld [vmem:[%s175 + $0x9d0] sm:$0xff]
                %494 = vst [vmem:[%s176 + $0x4f0] sm:$0xff] %v493
                %v495 = vld [vmem:[%s175 + $0x9d8] sm:$0xff]
                %496 = vst [vmem:[%s176 + $0x4f8] sm:$0xff] %v495
                %v497 = vld [vmem:[%s175 + $0x9e0] sm:$0xff]
                %498 = vst [vmem:[%s176 + $0x500] sm:$0xff] %v497
                %v499 = vld [vmem:[%s175 + $0x9e8] sm:$0xff]
                %500 = vst [vmem:[%s176 + $0x508] sm:$0xff] %v499
                %v501 = vld [vmem:[%s175 + $0xa20] sm:$0xff]
                %502 = vst [vmem:[%s176 + $0x510] sm:$0xff] %v501
                %v503 = vld [vmem:[%s175 + $0xa28] sm:$0xff]
                %504 = vst [vmem:[%s176 + $0x518] sm:$0xff] %v503
                %v505 = vld [vmem:[%s175 + $0xa30] sm:$0xff]
                %506 = vst [vmem:[%s176 + $0x520] sm:$0xff] %v505
                %v507 = vld [vmem:[%s175 + $0xa38] sm:$0xff]
                %508 = vst [vmem:[%s176 + $0x528] sm:$0xff] %v507
                %v509 = vld [vmem:[%s175 + $0xa40] sm:$0xff]
                %510 = vst [vmem:[%s176 + $0x530] sm:$0xff] %v509
                %v511 = vld [vmem:[%s175 + $0xa48] sm:$0xff]
                %512 = vst [vmem:[%s176 + $0x538] sm:$0xff] %v511
                %v513 = vld [vmem:[%s175 + $0xa80] sm:$0xff]
                %514 = vst [vmem:[%s176 + $0x540] sm:$0xff] %v513
                %v515 = vld [vmem:[%s175 + $0xa88] sm:$0xff]
                %516 = vst [vmem:[%s176 + $0x548] sm:$0xff] %v515
                %v517 = vld [vmem:[%s175 + $0xa90] sm:$0xff]
                %518 = vst [vmem:[%s176 + $0x550] sm:$0xff] %v517
                %v519 = vld [vmem:[%s175 + $0xa98] sm:$0xff]
                %520 = vst [vmem:[%s176 + $0x558] sm:$0xff] %v519
                %v521 = vld [vmem:[%s175 + $0xaa0] sm:$0xff]
                %522 = vst [vmem:[%s176 + $0x560] sm:$0xff] %v521
                %v523 = vld [vmem:[%s175 + $0xaa8] sm:$0xff]
                %524 = vst [vmem:[%s176 + $0x568] sm:$0xff] %v523
                %v525 = vld [vmem:[%s175 + $0xae0] sm:$0xff]
                %526 = vst [vmem:[%s176 + $0x570] sm:$0xff] %v525
                %v527 = vld [vmem:[%s175 + $0xae8] sm:$0xff]
                %528 = vst [vmem:[%s176 + $0x578] sm:$0xff] %v527
                %v529 = vld [vmem:[%s175 + $0xaf0] sm:$0xff]
                %530 = vst [vmem:[%s176 + $0x580] sm:$0xff] %v529
                %v531 = vld [vmem:[%s175 + $0xaf8] sm:$0xff]
                %532 = vst [vmem:[%s176 + $0x588] sm:$0xff] %v531
                %v533 = vld [vmem:[%s175 + $0xb00] sm:$0xff]
                %534 = vst [vmem:[%s176 + $0x590] sm:$0xff] %v533
                %v535 = vld [vmem:[%s175 + $0xb08] sm:$0xff]
                %536 = vst [vmem:[%s176 + $0x598] sm:$0xff] %v535
                %v537 = vld [vmem:[%s175 + $0xb40] sm:$0xff]
                %538 = vst [vmem:[%s176 + $0x5a0] sm:$0xff] %v537
                %v539 = vld [vmem:[%s175 + $0xb48] sm:$0xff]
                %540 = vst [vmem:[%s176 + $0x5a8] sm:$0xff] %v539
                %v541 = vld [vmem:[%s175 + $0xb50] sm:$0xff]
                %542 = vst [vmem:[%s176 + $0x5b0] sm:$0xff] %v541
                %v543 = vld [vmem:[%s175 + $0xb58] sm:$0xff]
                %544 = vst [vmem:[%s176 + $0x5b8] sm:$0xff] %v543
                %v545 = vld [vmem:[%s175 + $0xb60] sm:$0xff]
                %546 = vst [vmem:[%s176 + $0x5c0] sm:$0xff] %v545
                %v547 = vld [vmem:[%s175 + $0xb68] sm:$0xff]
                %548 = vst [vmem:[%s176 + $0x5c8] sm:$0xff] %v547
                %v549 = vld [vmem:[%s175 + $0xba0] sm:$0xff]
                %550 = vst [vmem:[%s176 + $0x5d0] sm:$0xff] %v549
                %v551 = vld [vmem:[%s175 + $0xba8] sm:$0xff]
                %552 = vst [vmem:[%s176 + $0x5d8] sm:$0xff] %v551
                %v553 = vld [vmem:[%s175 + $0xbb0] sm:$0xff]
                %554 = vst [vmem:[%s176 + $0x5e0] sm:$0xff] %v553
                %v555 = vld [vmem:[%s175 + $0xbb8] sm:$0xff]
                %556 = vst [vmem:[%s176 + $0x5e8] sm:$0xff] %v555
                %v557 = vld [vmem:[%s175 + $0xbc0] sm:$0xff]
                %558 = vst [vmem:[%s176 + $0x5f0] sm:$0xff] %v557
                %v559 = vld [vmem:[%s175 + $0xbc8] sm:$0xff]
                %560 = vst [vmem:[%s176 + $0x5f8] sm:$0xff] %v559
              $region37: #{_feed_forward_impl.1} parent=31 // loop_footer
                %s174 = sadd.s32 1, %s170
              $region38: #{_feed_forward_impl.1} parent=31 // loop_footer_branch
                %169 = sbr.rel target = $region34
              $region39: #{_feed_forward_impl.1} parent=31 // loop_exit
                _
            $region32: #{_feed_forward_impl.1} parent=27 // pred_fallthru
              _
            // Predicated region
            $region40: #{_feed_forward_impl.1} parent=27 // pred_check
              _
            $region41: #{_feed_forward_impl.1} parent=27 // pred_check_branch
              %562 = sbr.rel target = $region43
            $region42: #{_feed_forward_impl.1} parent=27 // pred_region
              _
            $region43: #{_feed_forward_impl.1} parent=27 // pred_fallthru
              _
          $region28: #{_feed_forward_impl.1} parent=23 // pred_fallthru
            _
          %563 = vnop
        $region24: #{_feed_forward_impl.1} parent=19 // pred_fallthru
          _
        // Predicated region
        $region44: #{_feed_forward_impl.1} parent=19 // pred_check
          %p564 = pneg %p94
        $region45: #{_feed_forward_impl.1} parent=19 // pred_check_branch
          %566 = sbr.rel (%p564) target = $region47
        $region46: #{_feed_forward_impl.1} parent=19 // pred_region
          %s567 = smul.u32 48, %s18
          %p568 = scmp.lt.s32.totalorder %s567, 95
          %s569 = scalar_select %p568, %s567, 95
          %s570 = smul.addr %s569, 2
          %s571 = smul.addr %s570, 8
          %s572 = scalar_lea.vmem %s2, %s571
          %s573 = smul.u32 48, %s18
        $region47: #{_feed_forward_impl.1} parent=19 // pred_fallthru
          _
      $region20: #{_feed_forward_impl.1} parent=5 // pred_fallthru
        _
      %p574 = scmp.le.s32.totalorder 1, %s10
      %p575 = scmp.lt.s32.totalorder %s10, 3
      %p576 = pnand %p574, %p575
      %p577 = pneg %p576
      // Predicated region
      $region48: #{_feed_forward_impl.1} parent=5 // pred_check
        _
      $region49: #{_feed_forward_impl.1} parent=5 // pred_check_branch
        %579 = sbr.rel (%p576) target = $region51
      $region50: #{_feed_forward_impl.1} parent=5 // pred_region
        %s580 = ssub.s32 %s10, 1
        %s581 = sand.u32 %s61, 1
        %s582 = sand.u32 %s61, 1
        %s583 = smul.addr %s582, 1536
        %s584 = scalar_lea.vmem [#allocation3], %s583
        // Predicated region
        $region52: #{_feed_forward_impl.1} parent=50 // pred_check
          %p585 = pneg %p74
        $region53: #{_feed_forward_impl.1} parent=50 // pred_check_branch
          %587 = sbr.rel (%p585) target = $region55
        $region54: #{_feed_forward_impl.1} parent=50 // pred_region
          _
        $region55: #{_feed_forward_impl.1} parent=50 // pred_fallthru
          _
        %s588 = smul.u32 2, %s19
        %p589 = scmp.lt.s32.totalorder %s588, 1
        %s590 = scalar_select %p589, %s588, 1
        %s591 = smul.addr %s590, 2
        %s592 = smul.addr %s591, 8
        %s593 = scalar_lea.vmem %s0, %s592
        %p594 = pneg %p48
        %p595 = pneg %p45
        %s596 = sand.u32 %s61, 1
        %s597 = sand.u32 %s61, 1
        %s598 = smul.addr %s597, 1536
        %s599 = scalar_lea.vmem [#allocation3], %s598
        %p600 = pneg %p74
        %p601 = pneg %p71
        %s602 = smul.u32 48, %s20
        %p603 = scmp.lt.s32.totalorder %s602, 95
        %s604 = scalar_select %p603, %s602, 95
        %s605 = smul.addr %s604, 2
        %s606 = smul.addr %s605, 8
        %s607 = scalar_lea.vmem %s2, %s606
        %p608 = pneg %p100
        %p609 = pneg %p97
        %p610 = pneg %p126
        %p611 = pneg %p123
        %s612 = smul.u32 2, %s19
        %p613 = scmp.lt.s32.totalorder %s612, 1
        %s614 = scalar_select %p613, %s612, 1
        %s615 = smul.addr %s614, 2
        %s616 = smul.addr %s615, 8
        %s617 = scalar_lea.vmem %s0, %s616
        %s618 = smul.u32 2, %s19
        %s619 = smul.u32 6, %s20
        %s620 = smul.u32 48, %s20
        %p621 = scmp.lt.s32.totalorder %s620, 95
        %s622 = scalar_select %p621, %s620, 95
        %s623 = smul.addr %s622, 2
        %s624 = smul.addr %s623, 8
        %s625 = scalar_lea.vmem %s2, %s624
        %s626 = smul.u32 48, %s20
        %s627 = smul.u32 2, %s19
        %v628 = vld [vmem:[%s617] sm:$0xff]
        %v629 = vld [vmem:[%s617 + $0x8] sm:$0xff]
        %v630 = vld [vmem:[%s617 + $0x10] sm:$0xff]
        %v631 = vld [vmem:[%s617 + $0x18] sm:$0xff]
        %v632 = vld [vmem:[%s584] sm:$0xff]
        %v633 = vld [vmem:[%s584 + $0x8] sm:$0xff]
        %v634 = vld [vmem:[%s584 + $0x10] sm:$0xff]
        %v635 = vld [vmem:[%s584 + $0x18] sm:$0xff]
        %v636 = vld [vmem:[%s584 + $0x20] sm:$0xff]
        %v637 = vld [vmem:[%s584 + $0x28] sm:$0xff]
        %v638 = vld [vmem:[%s584 + $0x30] sm:$0xff]
        %v639 = vld [vmem:[%s584 + $0x38] sm:$0xff]
        %v640 = vld [vmem:[%s584 + $0x40] sm:$0xff]
        %v641 = vld [vmem:[%s584 + $0x48] sm:$0xff]
        %v642 = vld [vmem:[%s584 + $0x50] sm:$0xff]
        %v643 = vld [vmem:[%s584 + $0x58] sm:$0xff]
        %v644 = vld [vmem:[%s584 + $0x60] sm:$0xff]
        %v645 = vld [vmem:[%s584 + $0x68] sm:$0xff]
        %v646 = vld [vmem:[%s584 + $0x70] sm:$0xff]
        %v647 = vld [vmem:[%s584 + $0x78] sm:$0xff]
        %v648 = vld [vmem:[%s584 + $0x80] sm:$0xff]
        %v649 = vld [vmem:[%s584 + $0x88] sm:$0xff]
        %v650 = vld [vmem:[%s584 + $0x90] sm:$0xff]
        %v651 = vld [vmem:[%s584 + $0x98] sm:$0xff]
        %v652 = vld [vmem:[%s584 + $0xa0] sm:$0xff]
        %v653 = vld [vmem:[%s584 + $0xa8] sm:$0xff]
        %v654 = vld [vmem:[%s584 + $0xb0] sm:$0xff]
        %v655 = vld [vmem:[%s584 + $0xb8] sm:$0xff]
        %v656 = vld [vmem:[%s584 + $0xc0] sm:$0xff]
        %v657 = vld [vmem:[%s584 + $0xc8] sm:$0xff]
        %v658 = vld [vmem:[%s584 + $0xd0] sm:$0xff]
        %v659 = vld [vmem:[%s584 + $0xd8] sm:$0xff]
        %v660 = vld [vmem:[%s584 + $0xe0] sm:$0xff]
        %v661 = vld [vmem:[%s584 + $0xe8] sm:$0xff]
        %v662 = vld [vmem:[%s584 + $0xf0] sm:$0xff]
        %v663 = vld [vmem:[%s584 + $0xf8] sm:$0xff]
        %v664 = vld [vmem:[%s584 + $0x100] sm:$0xff]
        %v665 = vld [vmem:[%s584 + $0x108] sm:$0xff]
        %v666 = vld [vmem:[%s584 + $0x110] sm:$0xff]
        %v667 = vld [vmem:[%s584 + $0x118] sm:$0xff]
        %v668 = vld [vmem:[%s584 + $0x120] sm:$0xff]
        %v669 = vld [vmem:[%s584 + $0x128] sm:$0xff]
        %v670 = vld [vmem:[%s584 + $0x130] sm:$0xff]
        %v671 = vld [vmem:[%s584 + $0x138] sm:$0xff]
        %v672 = vld [vmem:[%s584 + $0x140] sm:$0xff]
        %v673 = vld [vmem:[%s584 + $0x148] sm:$0xff]
        %v674 = vld [vmem:[%s584 + $0x150] sm:$0xff]
        %v675 = vld [vmem:[%s584 + $0x158] sm:$0xff]
        %v676 = vld [vmem:[%s584 + $0x160] sm:$0xff]
        %v677 = vld [vmem:[%s584 + $0x168] sm:$0xff]
        %v678 = vld [vmem:[%s584 + $0x170] sm:$0xff]
        %v679 = vld [vmem:[%s584 + $0x178] sm:$0xff]
        %v680 = vld [vmem:[%s584 + $0x180] sm:$0xff]
        %v681 = vld [vmem:[%s584 + $0x188] sm:$0xff]
        %v682 = vld [vmem:[%s584 + $0x190] sm:$0xff]
        %v683 = vld [vmem:[%s584 + $0x198] sm:$0xff]
        %v684 = vld [vmem:[%s584 + $0x1a0] sm:$0xff]
        %v685 = vld [vmem:[%s584 + $0x1a8] sm:$0xff]
        %v686 = vld [vmem:[%s584 + $0x1b0] sm:$0xff]
        %v687 = vld [vmem:[%s584 + $0x1b8] sm:$0xff]
        %v688 = vld [vmem:[%s584 + $0x1c0] sm:$0xff]
        %v689 = vld [vmem:[%s584 + $0x1c8] sm:$0xff]
        %v690 = vld [vmem:[%s584 + $0x1d0] sm:$0xff]
        %v691 = vld [vmem:[%s584 + $0x1d8] sm:$0xff]
        %v692 = vld [vmem:[%s584 + $0x1e0] sm:$0xff]
        %v693 = vld [vmem:[%s584 + $0x1e8] sm:$0xff]
        %v694 = vld [vmem:[%s584 + $0x1f0] sm:$0xff]
        %v695 = vld [vmem:[%s584 + $0x1f8] sm:$0xff]
        %v696 = vld [vmem:[%s584 + $0x200] sm:$0xff]
        %v697 = vld [vmem:[%s584 + $0x208] sm:$0xff]
        %v698 = vld [vmem:[%s584 + $0x210] sm:$0xff]
        %v699 = vld [vmem:[%s584 + $0x218] sm:$0xff]
        %v700 = vld [vmem:[%s584 + $0x220] sm:$0xff]
        %v701 = vld [vmem:[%s584 + $0x228] sm:$0xff]
        %v702 = vld [vmem:[%s584 + $0x230] sm:$0xff]
        %v703 = vld [vmem:[%s584 + $0x238] sm:$0xff]
        %v704 = vld [vmem:[%s584 + $0x240] sm:$0xff]
        %v705 = vld [vmem:[%s584 + $0x248] sm:$0xff]
        %v706 = vld [vmem:[%s584 + $0x250] sm:$0xff]
        %v707 = vld [vmem:[%s584 + $0x258] sm:$0xff]
        %v708 = vld [vmem:[%s584 + $0x260] sm:$0xff]
        %v709 = vld [vmem:[%s584 + $0x268] sm:$0xff]
        %v710 = vld [vmem:[%s584 + $0x270] sm:$0xff]
        %v711 = vld [vmem:[%s584 + $0x278] sm:$0xff]
        %v712 = vld [vmem:[%s584 + $0x280] sm:$0xff]
        %v713 = vld [vmem:[%s584 + $0x288] sm:$0xff]
        %v714 = vld [vmem:[%s584 + $0x290] sm:$0xff]
        %v715 = vld [vmem:[%s584 + $0x298] sm:$0xff]
        %v716 = vld [vmem:[%s584 + $0x2a0] sm:$0xff]
        %v717 = vld [vmem:[%s584 + $0x2a8] sm:$0xff]
        %v718 = vld [vmem:[%s584 + $0x2b0] sm:$0xff]
        %v719 = vld [vmem:[%s584 + $0x2b8] sm:$0xff]
        %v720 = vld [vmem:[%s584 + $0x2c0] sm:$0xff]
        %v721 = vld [vmem:[%s584 + $0x2c8] sm:$0xff]
        %v722 = vld [vmem:[%s584 + $0x2d0] sm:$0xff]
        %v723 = vld [vmem:[%s584 + $0x2d8] sm:$0xff]
        %v724 = vld [vmem:[%s584 + $0x2e0] sm:$0xff]
        %v725 = vld [vmem:[%s584 + $0x2e8] sm:$0xff]
        %v726 = vld [vmem:[%s584 + $0x2f0] sm:$0xff]
        %v727 = vld [vmem:[%s584 + $0x2f8] sm:$0xff]
        %v728 = vld [vmem:[%s584 + $0x300] sm:$0xff]
        %v729 = vld [vmem:[%s584 + $0x308] sm:$0xff]
        %v730 = vld [vmem:[%s584 + $0x310] sm:$0xff]
        %v731 = vld [vmem:[%s584 + $0x318] sm:$0xff]
        %v732 = vld [vmem:[%s584 + $0x320] sm:$0xff]
        %v733 = vld [vmem:[%s584 + $0x328] sm:$0xff]
        %v734 = vld [vmem:[%s584 + $0x330] sm:$0xff]
        %v735 = vld [vmem:[%s584 + $0x338] sm:$0xff]
        %v736 = vld [vmem:[%s584 + $0x340] sm:$0xff]
        %v737 = vld [vmem:[%s584 + $0x348] sm:$0xff]
        %v738 = vld [vmem:[%s584 + $0x350] sm:$0xff]
        %v739 = vld [vmem:[%s584 + $0x358] sm:$0xff]
        %v740 = vld [vmem:[%s584 + $0x360] sm:$0xff]
        %v741 = vld [vmem:[%s584 + $0x368] sm:$0xff]
        %v742 = vld [vmem:[%s584 + $0x370] sm:$0xff]
        %v743 = vld [vmem:[%s584 + $0x378] sm:$0xff]
        %v744 = vld [vmem:[%s584 + $0x380] sm:$0xff]
        %v745 = vld [vmem:[%s584 + $0x388] sm:$0xff]
        %v746 = vld [vmem:[%s584 + $0x390] sm:$0xff]
        %v747 = vld [vmem:[%s584 + $0x398] sm:$0xff]
        %v748 = vld [vmem:[%s584 + $0x3a0] sm:$0xff]
        %v749 = vld [vmem:[%s584 + $0x3a8] sm:$0xff]
        %v750 = vld [vmem:[%s584 + $0x3b0] sm:$0xff]
        %v751 = vld [vmem:[%s584 + $0x3b8] sm:$0xff]
        %v752 = vld [vmem:[%s584 + $0x3c0] sm:$0xff]
        %v753 = vld [vmem:[%s584 + $0x3c8] sm:$0xff]
        %v754 = vld [vmem:[%s584 + $0x3d0] sm:$0xff]
        %v755 = vld [vmem:[%s584 + $0x3d8] sm:$0xff]
        %v756 = vld [vmem:[%s584 + $0x3e0] sm:$0xff]
        %v757 = vld [vmem:[%s584 + $0x3e8] sm:$0xff]
        %v758 = vld [vmem:[%s584 + $0x3f0] sm:$0xff]
        %v759 = vld [vmem:[%s584 + $0x3f8] sm:$0xff]
        %v760 = vld [vmem:[%s584 + $0x400] sm:$0xff]
        %v761 = vld [vmem:[%s584 + $0x408] sm:$0xff]
        %v762 = vld [vmem:[%s584 + $0x410] sm:$0xff]
        %v763 = vld [vmem:[%s584 + $0x418] sm:$0xff]
        %v764 = vld [vmem:[%s584 + $0x420] sm:$0xff]
        %v765 = vld [vmem:[%s584 + $0x428] sm:$0xff]
        %v766 = vld [vmem:[%s584 + $0x430] sm:$0xff]
        %v767 = vld [vmem:[%s584 + $0x438] sm:$0xff]
        %v768 = vld [vmem:[%s584 + $0x440] sm:$0xff]
        %v769 = vld [vmem:[%s584 + $0x448] sm:$0xff]
        %v770 = vld [vmem:[%s584 + $0x450] sm:$0xff]
        %v771 = vld [vmem:[%s584 + $0x458] sm:$0xff]
        %v772 = vld [vmem:[%s584 + $0x460] sm:$0xff]
        %v773 = vld [vmem:[%s584 + $0x468] sm:$0xff]
        %v774 = vld [vmem:[%s584 + $0x470] sm:$0xff]
        %v775 = vld [vmem:[%s584 + $0x478] sm:$0xff]
        %v776 = vld [vmem:[%s584 + $0x480] sm:$0xff]
        %v777 = vld [vmem:[%s584 + $0x488] sm:$0xff]
        %v778 = vld [vmem:[%s584 + $0x490] sm:$0xff]
        %v779 = vld [vmem:[%s584 + $0x498] sm:$0xff]
        %v780 = vld [vmem:[%s584 + $0x4a0] sm:$0xff]
        %v781 = vld [vmem:[%s584 + $0x4a8] sm:$0xff]
        %v782 = vld [vmem:[%s584 + $0x4b0] sm:$0xff]
        %v783 = vld [vmem:[%s584 + $0x4b8] sm:$0xff]
        %v784 = vld [vmem:[%s584 + $0x4c0] sm:$0xff]
        %v785 = vld [vmem:[%s584 + $0x4c8] sm:$0xff]
        %v786 = vld [vmem:[%s584 + $0x4d0] sm:$0xff]
        %v787 = vld [vmem:[%s584 + $0x4d8] sm:$0xff]
        %v788 = vld [vmem:[%s584 + $0x4e0] sm:$0xff]
        %v789 = vld [vmem:[%s584 + $0x4e8] sm:$0xff]
        %v790 = vld [vmem:[%s584 + $0x4f0] sm:$0xff]
        %v791 = vld [vmem:[%s584 + $0x4f8] sm:$0xff]
        %v792 = vld [vmem:[%s584 + $0x500] sm:$0xff]
        %v793 = vld [vmem:[%s584 + $0x508] sm:$0xff]
        %v794 = vld [vmem:[%s584 + $0x510] sm:$0xff]
        %v795 = vld [vmem:[%s584 + $0x518] sm:$0xff]
        %v796 = vld [vmem:[%s584 + $0x520] sm:$0xff]
        %v797 = vld [vmem:[%s584 + $0x528] sm:$0xff]
        %v798 = vld [vmem:[%s584 + $0x530] sm:$0xff]
        %v799 = vld [vmem:[%s584 + $0x538] sm:$0xff]
        %v800 = vld [vmem:[%s584 + $0x540] sm:$0xff]
        %v801 = vld [vmem:[%s584 + $0x548] sm:$0xff]
        %v802 = vld [vmem:[%s584 + $0x550] sm:$0xff]
        %v803 = vld [vmem:[%s584 + $0x558] sm:$0xff]
        %v804 = vld [vmem:[%s584 + $0x560] sm:$0xff]
        %v805 = vld [vmem:[%s584 + $0x568] sm:$0xff]
        %v806 = vld [vmem:[%s584 + $0x570] sm:$0xff]
        %v807 = vld [vmem:[%s584 + $0x578] sm:$0xff]
        %v808 = vld [vmem:[%s584 + $0x580] sm:$0xff]
        %v809 = vld [vmem:[%s584 + $0x588] sm:$0xff]
        %v810 = vld [vmem:[%s584 + $0x590] sm:$0xff]
        %v811 = vld [vmem:[%s584 + $0x598] sm:$0xff]
        %v812 = vld [vmem:[%s584 + $0x5a0] sm:$0xff]
        %v813 = vld [vmem:[%s584 + $0x5a8] sm:$0xff]
        %v814 = vld [vmem:[%s584 + $0x5b0] sm:$0xff]
        %v815 = vld [vmem:[%s584 + $0x5b8] sm:$0xff]
        %v816 = vld [vmem:[%s584 + $0x5c0] sm:$0xff]
        %v817 = vld [vmem:[%s584 + $0x5c8] sm:$0xff]
        %v818 = vld [vmem:[%s584 + $0x5d0] sm:$0xff]
        %v819 = vld [vmem:[%s584 + $0x5d8] sm:$0xff]
        %v820 = vld [vmem:[%s584 + $0x5e0] sm:$0xff]
        %v821 = vld [vmem:[%s584 + $0x5e8] sm:$0xff]
        %v822 = vld [vmem:[%s584 + $0x5f0] sm:$0xff]
        %v823 = vld [vmem:[%s584 + $0x5f8] sm:$0xff]
        %824 = vmatprep.subr.mxu0 %v723
        %825 = vmatpush1.msra.mxu0 %v722
        %826 = vmatprep.subr.mxu0 %v717
        %827 = vmatpush1.msra.mxu0 %v716
        %828 = vmatprep.subr.mxu0 %v711
        %829 = vmatpush1.msra.mxu0 %v710
        %830 = vmatprep.subr.mxu0 %v705
        %831 = vmatpush1.msra.mxu0 %v704
        %832 = vmatprep.subr.mxu0 %v699
        %833 = vmatpush1.msra.mxu0 %v698
        %834 = vmatprep.subr.mxu0 %v693
        %835 = vmatpush1.msra.mxu0 %v692
        %836 = vmatprep.subr.mxu0 %v687
        %837 = vmatpush1.msra.mxu0 %v686
        %838 = vmatprep.subr.mxu0 %v681
        %839 = vmatpush1.msra.mxu0 %v680
        %840 = vmatprep.subr.mxu0 %v675
        %841 = vmatpush1.msra.mxu0 %v674
        %842 = vmatprep.subr.mxu0 %v669
        %843 = vmatpush1.msra.mxu0 %v668
        %844 = vmatprep.subr.mxu0 %v663
        %845 = vmatpush1.msra.mxu0 %v662
        %846 = vmatprep.subr.mxu0 %v657
        %847 = vmatpush1.msra.mxu0 %v656
        %848 = vmatprep.subr.mxu0 %v651
        %849 = vmatpush1.msra.mxu0 %v650
        %850 = vmatprep.subr.mxu0 %v645
        %851 = vmatpush1.msra.mxu0 %v644
        %852 = vmatprep.subr.mxu0 %v639
        %853 = vmatpush1.msra.mxu0 %v638
        %854 = vmatprep.subr.mxu0 %v633
        %855 = vmatpush1.msra.mxu0 %v632
        %856 = vmatprep.subr.mxu0 %v819
        %857 = vmatpush2.msra.mxu0 %v818
        %858 = vmatprep.subr.mxu0 %v813
        %859 = vmatpush2.msra.mxu0 %v812
        %860 = vmatprep.subr.mxu0 %v807
        %861 = vmatpush2.msra.mxu0 %v806
        %862 = vmatprep.subr.mxu0 %v801
        %863 = vmatpush2.msra.mxu0 %v800
        %864 = vmatprep.subr.mxu0 %v795
        %865 = vmatpush2.msra.mxu0 %v794
        %866 = vmatprep.subr.mxu0 %v789
        %867 = vmatpush2.msra.mxu0 %v788
        %868 = vmatprep.subr.mxu0 %v783
        %869 = vmatpush2.msra.mxu0 %v782
        %870 = vmatprep.subr.mxu0 %v777
        %871 = vmatpush2.msra.mxu0 %v776
        %872 = vmatprep.subr.mxu0 %v771
        %873 = vmatpush2.msra.mxu0 %v770
        %874 = vmatprep.subr.mxu0 %v765
        %875 = vmatpush2.msra.mxu0 %v764
        %876 = vmatprep.subr.mxu0 %v759
        %877 = vmatpush2.msra.mxu0 %v758
        %878 = vmatprep.subr.mxu0 %v753
        %879 = vmatpush2.msra.mxu0 %v752
        %880 = vmatprep.subr.mxu0 %v747
        %881 = vmatpush2.msra.mxu0 %v746
        %882 = vmatprep.subr.mxu0 %v741
        %883 = vmatpush2.msra.mxu0 %v740
        %884 = vmatprep.subr.mxu0 %v735
        %885 = vmatpush2.msra.mxu0 %v734
        %886 = vmatprep.subr.mxu0 %v729
        %887 = vmatpush2.msra.mxu0 %v728
        %888 = vmatprep.mubr.f32.mxu0 %v629
        %889 = vmatmul.mubr.f32.gmra.mxu0 %v628
        %v890 = vpop.f32.mrf.mxu0
        %v891 = vadd.f32 0.0, %v890
        %v892 = vpop.f32.mrf.mxu0
        %v893 = vadd.f32 0.0, %v892
        %894 = vmatprep.mubr.f32.mxu0 %v631
        %895 = vmatmul.mubr.f32.gmra.mxu0 %v630
        %v896 = vpop.f32.mrf.mxu0
        %v897 = vadd.f32 0.0, %v896
        %v898 = vpop.f32.mrf.mxu0
        %v899 = vadd.f32 0.0, %v898
        %900 = vdwg.mxu0
        %901 = vmatprep.subr.mxu0 %v725
        %902 = vmatpush1.msra.mxu0 %v724
        %903 = vmatprep.subr.mxu0 %v719
        %904 = vmatpush1.msra.mxu0 %v718
        %905 = vmatprep.subr.mxu0 %v713
        %906 = vmatpush1.msra.mxu0 %v712
        %907 = vmatprep.subr.mxu0 %v707
        %908 = vmatpush1.msra.mxu0 %v706
        %909 = vmatprep.subr.mxu0 %v701
        %910 = vmatpush1.msra.mxu0 %v700
        %911 = vmatprep.subr.mxu0 %v695
        %912 = vmatpush1.msra.mxu0 %v694
        %913 = vmatprep.subr.mxu0 %v689
        %914 = vmatpush1.msra.mxu0 %v688
        %915 = vmatprep.subr.mxu0 %v683
        %916 = vmatpush1.msra.mxu0 %v682
        %917 = vmatprep.subr.mxu0 %v677
        %918 = vmatpush1.msra.mxu0 %v676
        %919 = vmatprep.subr.mxu0 %v671
        %920 = vmatpush1.msra.mxu0 %v670
        %921 = vmatprep.subr.mxu0 %v665
        %922 = vmatpush1.msra.mxu0 %v664
        %923 = vmatprep.subr.mxu0 %v659
        %924 = vmatpush1.msra.mxu0 %v658
        %925 = vmatprep.subr.mxu0 %v653
        %926 = vmatpush1.msra.mxu0 %v652
        %927 = vmatprep.subr.mxu0 %v647
        %928 = vmatpush1.msra.mxu0 %v646
        %929 = vmatprep.subr.mxu0 %v641
        %930 = vmatpush1.msra.mxu0 %v640
        %931 = vmatprep.subr.mxu0 %v635
        %932 = vmatpush1.msra.mxu0 %v634
        %933 = vmatprep.subr.mxu0 %v821
        %934 = vmatpush2.msra.mxu0 %v820
        %935 = vmatprep.subr.mxu0 %v815
        %936 = vmatpush2.msra.mxu0 %v814
        %937 = vmatprep.subr.mxu0 %v809
        %938 = vmatpush2.msra.mxu0 %v808
        %939 = vmatprep.subr.mxu0 %v803
        %940 = vmatpush2.msra.mxu0 %v802
        %941 = vmatprep.subr.mxu0 %v797
        %942 = vmatpush2.msra.mxu0 %v796
        %943 = vmatprep.subr.mxu0 %v791
        %944 = vmatpush2.msra.mxu0 %v790
        %945 = vmatprep.subr.mxu0 %v785
        %946 = vmatpush2.msra.mxu0 %v784
        %947 = vmatprep.subr.mxu0 %v779
        %948 = vmatpush2.msra.mxu0 %v778
        %949 = vmatprep.subr.mxu0 %v773
        %950 = vmatpush2.msra.mxu0 %v772
        %951 = vmatprep.subr.mxu0 %v767
        %952 = vmatpush2.msra.mxu0 %v766
        %953 = vmatprep.subr.mxu0 %v761
        %954 = vmatpush2.msra.mxu0 %v760
        %955 = vmatprep.subr.mxu0 %v755
        %956 = vmatpush2.msra.mxu0 %v754
        %957 = vmatprep.subr.mxu0 %v749
        %958 = vmatpush2.msra.mxu0 %v748
        %959 = vmatprep.subr.mxu0 %v743
        %960 = vmatpush2.msra.mxu0 %v742
        %961 = vmatprep.subr.mxu0 %v737
        %962 = vmatpush2.msra.mxu0 %v736
        %963 = vmatprep.subr.mxu0 %v731
        %964 = vmatpush2.msra.mxu0 %v730
        %965 = vmatprep.mubr.f32.mxu0 %v629
        %966 = vmatmul.mubr.f32.gmra.mxu0 %v628
        %v967 = vpop.f32.mrf.mxu0
        %v968 = vadd.f32 0.0, %v967
        %v969 = vpop.f32.mrf.mxu0
        %v970 = vadd.f32 0.0, %v969
        %971 = vmatprep.mubr.f32.mxu0 %v631
        %972 = vmatmul.mubr.f32.gmra.mxu0 %v630
        %v973 = vpop.f32.mrf.mxu0
        %v974 = vadd.f32 0.0, %v973
        %v975 = vpop.f32.mrf.mxu0
        %v976 = vadd.f32 0.0, %v975
        %977 = vdwg.mxu0
        %978 = vmatprep.subr.mxu0 %v727
        %979 = vmatpush1.msra.mxu0 %v726
        %980 = vmatprep.subr.mxu0 %v721
        %981 = vmatpush1.msra.mxu0 %v720
        %982 = vmatprep.subr.mxu0 %v715
        %983 = vmatpush1.msra.mxu0 %v714
        %984 = vmatprep.subr.mxu0 %v709
        %985 = vmatpush1.msra.mxu0 %v708
        %986 = vmatprep.subr.mxu0 %v703
        %987 = vmatpush1.msra.mxu0 %v702
        %988 = vmatprep.subr.mxu0 %v697
        %989 = vmatpush1.msra.mxu0 %v696
        %990 = vmatprep.subr.mxu0 %v691
        %991 = vmatpush1.msra.mxu0 %v690
        %992 = vmatprep.subr.mxu0 %v685
        %993 = vmatpush1.msra.mxu0 %v684
        %994 = vmatprep.subr.mxu0 %v679
        %995 = vmatpush1.msra.mxu0 %v678
        %996 = vmatprep.subr.mxu0 %v673
        %997 = vmatpush1.msra.mxu0 %v672
        %998 = vmatprep.subr.mxu0 %v667
        %999 = vmatpush1.msra.mxu0 %v666
        %1000 = vmatprep.subr.mxu0 %v661
        %1001 = vmatpush1.msra.mxu0 %v660
        %1002 = vmatprep.subr.mxu0 %v655
        %1003 = vmatpush1.msra.mxu0 %v654
        %1004 = vmatprep.subr.mxu0 %v649
        %1005 = vmatpush1.msra.mxu0 %v648
        %1006 = vmatprep.subr.mxu0 %v643
        %1007 = vmatpush1.msra.mxu0 %v642
        %1008 = vmatprep.subr.mxu0 %v637
        %1009 = vmatpush1.msra.mxu0 %v636
        %1010 = vmatprep.subr.mxu0 %v823
        %1011 = vmatpush2.msra.mxu0 %v822
        %1012 = vmatprep.subr.mxu0 %v817
        %1013 = vmatpush2.msra.mxu0 %v816
        %1014 = vmatprep.subr.mxu0 %v811
        %1015 = vmatpush2.msra.mxu0 %v810
        %1016 = vmatprep.subr.mxu0 %v805
        %1017 = vmatpush2.msra.mxu0 %v804
        %1018 = vmatprep.subr.mxu0 %v799
        %1019 = vmatpush2.msra.mxu0 %v798
        %1020 = vmatprep.subr.mxu0 %v793
        %1021 = vmatpush2.msra.mxu0 %v792
        %1022 = vmatprep.subr.mxu0 %v787
        %1023 = vmatpush2.msra.mxu0 %v786
        %1024 = vmatprep.subr.mxu0 %v781
        %1025 = vmatpush2.msra.mxu0 %v780
        %1026 = vmatprep.subr.mxu0 %v775
        %1027 = vmatpush2.msra.mxu0 %v774
        %1028 = vmatprep.subr.mxu0 %v769
        %1029 = vmatpush2.msra.mxu0 %v768
        %1030 = vmatprep.subr.mxu0 %v763
        %1031 = vmatpush2.msra.mxu0 %v762
        %1032 = vmatprep.subr.mxu0 %v757
        %1033 = vmatpush2.msra.mxu0 %v756
        %1034 = vmatprep.subr.mxu0 %v751
        %1035 = vmatpush2.msra.mxu0 %v750
        %1036 = vmatprep.subr.mxu0 %v745
        %1037 = vmatpush2.msra.mxu0 %v744
        %1038 = vmatprep.subr.mxu0 %v739
        %1039 = vmatpush2.msra.mxu0 %v738
        %1040 = vmatprep.subr.mxu0 %v733
        %1041 = vmatpush2.msra.mxu0 %v732
        %1042 = vmatprep.mubr.f32.mxu0 %v629
        %1043 = vmatmul.mubr.f32.gmra.mxu0 %v628
        %v1044 = vpop.f32.mrf.mxu0
        %v1045 = vadd.f32 0.0, %v1044
        %v1046 = vpop.f32.mrf.mxu0
        %v1047 = vadd.f32 0.0, %v1046
        %1048 = vmatprep.mubr.f32.mxu0 %v631
        %1049 = vmatmul.mubr.f32.gmra.mxu0 %v630
        %v1050 = vpop.f32.mrf.mxu0
        %v1051 = vadd.f32 0.0, %v1050
        %v1052 = vpop.f32.mrf.mxu0
        %v1053 = vadd.f32 0.0, %v1052
        %1054 = vdwg.mxu0
        %v1055 = vxor.u32 %v891, 2147483648
        %v1056 = vxor.u32 %v893, 2147483648
        %v1057 = vxor.u32 %v968, 2147483648
        %v1058 = vxor.u32 %v897, 2147483648
        %v1059 = vxor.u32 %v899, 2147483648
        %v1060 = vxor.u32 %v974, 2147483648
        %v1061 = vmul.f32 %v1055, 1.442695
        %v1062 = vpow.pop %v1061
        %v1063 = vmul.f32 %v1056, 1.442695
        %v1064 = vpow.pop %v1063
        %v1065 = vmul.f32 %v1057, 1.442695
        %v1066 = vpow.pop %v1065
        %v1067 = vmul.f32 %v1058, 1.442695
        %v1068 = vpow.pop %v1067
        %v1069 = vmul.f32 %v1059, 1.442695
        %v1070 = vpow.pop %v1069
        %v1071 = vmul.f32 %v1060, 1.442695
        %v1072 = vpow.pop %v1071
        %v1073 = vadd.f32 %v1062, 1.0
        %v1074 = vadd.f32 %v1064, 1.0
        %v1075 = vadd.f32 %v1066, 1.0
        %v1076 = vadd.f32 %v1068, 1.0
        %v1077 = vadd.f32 %v1070, 1.0
        %v1078 = vadd.f32 %v1072, 1.0
        %v1079 = vrcp.pop %v1073
        %v1080 = vmul.f32 1.0, %v1079
        %v1081 = vrcp.pop %v1074
        %v1082 = vmul.f32 1.0, %v1081
        %v1083 = vrcp.pop %v1075
        %v1084 = vmul.f32 1.0, %v1083
        %v1085 = vrcp.pop %v1076
        %v1086 = vmul.f32 1.0, %v1085
        %v1087 = vrcp.pop %v1077
        %v1088 = vmul.f32 1.0, %v1087
        %v1089 = vrcp.pop %v1078
        %v1090 = vmul.f32 1.0, %v1089
        %v1091 = vmul.f32 %v891, %v1080
        %v1092 = vmul.f32 %v893, %v1082
        %v1093 = vmul.f32 %v968, %v1084
        %v1094 = vmul.f32 %v897, %v1086
        %v1095 = vmul.f32 %v899, %v1088
        %v1096 = vmul.f32 %v974, %v1090
        %v1097 = vmul.f32 %v1091, %v970
        %v1098 = vmul.f32 %v1092, %v1045
        %v1099 = vmul.f32 %v1093, %v1047
        %v1100 = vmul.f32 %v1094, %v976
        %v1101 = vmul.f32 %v1095, %v1051
        %v1102 = vmul.f32 %v1096, %v1053
        %v1103 = vld [vmem:[%s625] sm:$0xff]
        %v1104 = vld [vmem:[%s625 + $0x8] sm:$0xff]
        %v1105 = vld [vmem:[%s625 + $0x10] sm:$0xff]
        %v1106 = vld [vmem:[%s625 + $0x18] sm:$0xff]
        %v1107 = vld [vmem:[%s625 + $0x20] sm:$0xff]
        %v1108 = vld [vmem:[%s625 + $0x28] sm:$0xff]
        %v1109 = vld [vmem:[%s625 + $0x30] sm:$0xff]
        %v1110 = vld [vmem:[%s625 + $0x38] sm:$0xff]
        %v1111 = vld [vmem:[%s625 + $0x40] sm:$0xff]
        %v1112 = vld [vmem:[%s625 + $0x48] sm:$0xff]
        %v1113 = vld [vmem:[%s625 + $0x50] sm:$0xff]
        %v1114 = vld [vmem:[%s625 + $0x58] sm:$0xff]
        %v1115 = vld [vmem:[%s625 + $0x60] sm:$0xff]
        %v1116 = vld [vmem:[%s625 + $0x68] sm:$0xff]
        %v1117 = vld [vmem:[%s625 + $0x70] sm:$0xff]
        %v1118 = vld [vmem:[%s625 + $0x78] sm:$0xff]
        %v1119 = vld [vmem:[%s625 + $0x80] sm:$0xff]
        %v1120 = vld [vmem:[%s625 + $0x88] sm:$0xff]
        %v1121 = vld [vmem:[%s625 + $0x90] sm:$0xff]
        %v1122 = vld [vmem:[%s625 + $0x98] sm:$0xff]
        %v1123 = vld [vmem:[%s625 + $0xa0] sm:$0xff]
        %v1124 = vld [vmem:[%s625 + $0xa8] sm:$0xff]
        %v1125 = vld [vmem:[%s625 + $0xb0] sm:$0xff]
        %v1126 = vld [vmem:[%s625 + $0xb8] sm:$0xff]
        %v1127 = vld [vmem:[%s625 + $0xc0] sm:$0xff]
        %v1128 = vld [vmem:[%s625 + $0xc8] sm:$0xff]
        %v1129 = vld [vmem:[%s625 + $0xd0] sm:$0xff]
        %v1130 = vld [vmem:[%s625 + $0xd8] sm:$0xff]
        %v1131 = vld [vmem:[%s625 + $0xe0] sm:$0xff]
        %v1132 = vld [vmem:[%s625 + $0xe8] sm:$0xff]
        %v1133 = vld [vmem:[%s625 + $0xf0] sm:$0xff]
        %v1134 = vld [vmem:[%s625 + $0xf8] sm:$0xff]
        %v1135 = vld [vmem:[%s625 + $0x100] sm:$0xff]
        %v1136 = vld [vmem:[%s625 + $0x108] sm:$0xff]
        %v1137 = vld [vmem:[%s625 + $0x110] sm:$0xff]
        %v1138 = vld [vmem:[%s625 + $0x118] sm:$0xff]
        %v1139 = vld [vmem:[%s625 + $0x120] sm:$0xff]
        %v1140 = vld [vmem:[%s625 + $0x128] sm:$0xff]
        %v1141 = vld [vmem:[%s625 + $0x130] sm:$0xff]
        %v1142 = vld [vmem:[%s625 + $0x138] sm:$0xff]
        %v1143 = vld [vmem:[%s625 + $0x140] sm:$0xff]
        %v1144 = vld [vmem:[%s625 + $0x148] sm:$0xff]
        %v1145 = vld [vmem:[%s625 + $0x150] sm:$0xff]
        %v1146 = vld [vmem:[%s625 + $0x158] sm:$0xff]
        %v1147 = vld [vmem:[%s625 + $0x160] sm:$0xff]
        %v1148 = vld [vmem:[%s625 + $0x168] sm:$0xff]
        %v1149 = vld [vmem:[%s625 + $0x170] sm:$0xff]
        %v1150 = vld [vmem:[%s625 + $0x178] sm:$0xff]
        %v1151 = vld [vmem:[%s625 + $0x180] sm:$0xff]
        %v1152 = vld [vmem:[%s625 + $0x188] sm:$0xff]
        %v1153 = vld [vmem:[%s625 + $0x190] sm:$0xff]
        %v1154 = vld [vmem:[%s625 + $0x198] sm:$0xff]
        %v1155 = vld [vmem:[%s625 + $0x1a0] sm:$0xff]
        %v1156 = vld [vmem:[%s625 + $0x1a8] sm:$0xff]
        %v1157 = vld [vmem:[%s625 + $0x1b0] sm:$0xff]
        %v1158 = vld [vmem:[%s625 + $0x1b8] sm:$0xff]
        %v1159 = vld [vmem:[%s625 + $0x1c0] sm:$0xff]
        %v1160 = vld [vmem:[%s625 + $0x1c8] sm:$0xff]
        %v1161 = vld [vmem:[%s625 + $0x1d0] sm:$0xff]
        %v1162 = vld [vmem:[%s625 + $0x1d8] sm:$0xff]
        %v1163 = vld [vmem:[%s625 + $0x1e0] sm:$0xff]
        %v1164 = vld [vmem:[%s625 + $0x1e8] sm:$0xff]
        %v1165 = vld [vmem:[%s625 + $0x1f0] sm:$0xff]
        %v1166 = vld [vmem:[%s625 + $0x1f8] sm:$0xff]
        %v1167 = vld [vmem:[%s625 + $0x200] sm:$0xff]
        %v1168 = vld [vmem:[%s625 + $0x208] sm:$0xff]
        %v1169 = vld [vmem:[%s625 + $0x210] sm:$0xff]
        %v1170 = vld [vmem:[%s625 + $0x218] sm:$0xff]
        %v1171 = vld [vmem:[%s625 + $0x220] sm:$0xff]
        %v1172 = vld [vmem:[%s625 + $0x228] sm:$0xff]
        %v1173 = vld [vmem:[%s625 + $0x230] sm:$0xff]
        %v1174 = vld [vmem:[%s625 + $0x238] sm:$0xff]
        %v1175 = vld [vmem:[%s625 + $0x240] sm:$0xff]
        %v1176 = vld [vmem:[%s625 + $0x248] sm:$0xff]
        %v1177 = vld [vmem:[%s625 + $0x250] sm:$0xff]
        %v1178 = vld [vmem:[%s625 + $0x258] sm:$0xff]
        %v1179 = vld [vmem:[%s625 + $0x260] sm:$0xff]
        %v1180 = vld [vmem:[%s625 + $0x268] sm:$0xff]
        %v1181 = vld [vmem:[%s625 + $0x270] sm:$0xff]
        %v1182 = vld [vmem:[%s625 + $0x278] sm:$0xff]
        %v1183 = vld [vmem:[%s625 + $0x280] sm:$0xff]
        %v1184 = vld [vmem:[%s625 + $0x288] sm:$0xff]
        %v1185 = vld [vmem:[%s625 + $0x290] sm:$0xff]
        %v1186 = vld [vmem:[%s625 + $0x298] sm:$0xff]
        %v1187 = vld [vmem:[%s625 + $0x2a0] sm:$0xff]
        %v1188 = vld [vmem:[%s625 + $0x2a8] sm:$0xff]
        %v1189 = vld [vmem:[%s625 + $0x2b0] sm:$0xff]
        %v1190 = vld [vmem:[%s625 + $0x2b8] sm:$0xff]
        %v1191 = vld [vmem:[%s625 + $0x2c0] sm:$0xff]
        %v1192 = vld [vmem:[%s625 + $0x2c8] sm:$0xff]
        %v1193 = vld [vmem:[%s625 + $0x2d0] sm:$0xff]
        %v1194 = vld [vmem:[%s625 + $0x2d8] sm:$0xff]
        %v1195 = vld [vmem:[%s625 + $0x2e0] sm:$0xff]
        %v1196 = vld [vmem:[%s625 + $0x2e8] sm:$0xff]
        %v1197 = vld [vmem:[%s625 + $0x2f0] sm:$0xff]
        %v1198 = vld [vmem:[%s625 + $0x2f8] sm:$0xff]
        %1199 = vmatprep.subr.mxu0 %v1134
        %1200 = vmatpush1.msra.mxu0 %v1133
        %1201 = vmatprep.subr.mxu0 %v1132
        %1202 = vmatpush1.msra.mxu0 %v1131
        %1203 = vmatprep.subr.mxu0 %v1130
        %1204 = vmatpush1.msra.mxu0 %v1129
        %1205 = vmatprep.subr.mxu0 %v1128
        %1206 = vmatpush1.msra.mxu0 %v1127
        %1207 = vmatprep.subr.mxu0 %v1126
        %1208 = vmatpush1.msra.mxu0 %v1125
        %1209 = vmatprep.subr.mxu0 %v1124
        %1210 = vmatpush1.msra.mxu0 %v1123
        %1211 = vmatprep.subr.mxu0 %v1122
        %1212 = vmatpush1.msra.mxu0 %v1121
        %1213 = vmatprep.subr.mxu0 %v1120
        %1214 = vmatpush1.msra.mxu0 %v1119
        %1215 = vmatprep.subr.mxu0 %v1118
        %1216 = vmatpush1.msra.mxu0 %v1117
        %1217 = vmatprep.subr.mxu0 %v1116
        %1218 = vmatpush1.msra.mxu0 %v1115
        %1219 = vmatprep.subr.mxu0 %v1114
        %1220 = vmatpush1.msra.mxu0 %v1113
        %1221 = vmatprep.subr.mxu0 %v1112
        %1222 = vmatpush1.msra.mxu0 %v1111
        %1223 = vmatprep.subr.mxu0 %v1110
        %1224 = vmatpush1.msra.mxu0 %v1109
        %1225 = vmatprep.subr.mxu0 %v1108
        %1226 = vmatpush1.msra.mxu0 %v1107
        %1227 = vmatprep.subr.mxu0 %v1106
        %1228 = vmatpush1.msra.mxu0 %v1105
        %1229 = vmatprep.subr.mxu0 %v1104
        %1230 = vmatpush1.msra.mxu0 %v1103
        %1231 = vmatprep.subr.mxu0 %v1166
        %1232 = vmatpush2.msra.mxu0 %v1165
        %1233 = vmatprep.subr.mxu0 %v1164
        %1234 = vmatpush2.msra.mxu0 %v1163
        %1235 = vmatprep.subr.mxu0 %v1162
        %1236 = vmatpush2.msra.mxu0 %v1161
        %1237 = vmatprep.subr.mxu0 %v1160
        %1238 = vmatpush2.msra.mxu0 %v1159
        %1239 = vmatprep.subr.mxu0 %v1158
        %1240 = vmatpush2.msra.mxu0 %v1157
        %1241 = vmatprep.subr.mxu0 %v1156
        %1242 = vmatpush2.msra.mxu0 %v1155
        %1243 = vmatprep.subr.mxu0 %v1154
        %1244 = vmatpush2.msra.mxu0 %v1153
        %1245 = vmatprep.subr.mxu0 %v1152
        %1246 = vmatpush2.msra.mxu0 %v1151
        %1247 = vmatprep.subr.mxu0 %v1150
        %1248 = vmatpush2.msra.mxu0 %v1149
        %1249 = vmatprep.subr.mxu0 %v1148
        %1250 = vmatpush2.msra.mxu0 %v1147
        %1251 = vmatprep.subr.mxu0 %v1146
        %1252 = vmatpush2.msra.mxu0 %v1145
        %1253 = vmatprep.subr.mxu0 %v1144
        %1254 = vmatpush2.msra.mxu0 %v1143
        %1255 = vmatprep.subr.mxu0 %v1142
        %1256 = vmatpush2.msra.mxu0 %v1141
        %1257 = vmatprep.subr.mxu0 %v1140
        %1258 = vmatpush2.msra.mxu0 %v1139
        %1259 = vmatprep.subr.mxu0 %v1138
        %1260 = vmatpush2.msra.mxu0 %v1137
        %1261 = vmatprep.subr.mxu0 %v1136
        %1262 = vmatpush2.msra.mxu0 %v1135
        %1263 = vmatprep.mubr.f32.mxu0 %v1098
        %1264 = vmatmul.mubr.f32.gmra.mxu0 %v1097
        %v1265 = vpop.f32.mrf.mxu0
        %v1266 = vadd.f32 0.0, %v1265
        %v1267 = vpop.f32.mrf.mxu0
        %v1268 = vadd.f32 0.0, %v1267
        %1269 = vmatprep.mubr.f32.mxu0 %v1101
        %1270 = vmatmul.mubr.f32.gmra.mxu0 %v1100
        %v1271 = vpop.f32.mrf.mxu0
        %v1272 = vadd.f32 0.0, %v1271
        %v1273 = vpop.f32.mrf.mxu0
        %v1274 = vadd.f32 0.0, %v1273
        %1275 = vdwg.mxu0
        %1276 = vmatprep.subr.mxu0 %v1198
        %1277 = vmatpush1.msra.mxu0 %v1197
        %1278 = vmatprep.subr.mxu0 %v1196
        %1279 = vmatpush1.msra.mxu0 %v1195
        %1280 = vmatprep.subr.mxu0 %v1194
        %1281 = vmatpush1.msra.mxu0 %v1193
        %1282 = vmatprep.subr.mxu0 %v1192
        %1283 = vmatpush1.msra.mxu0 %v1191
        %1284 = vmatprep.subr.mxu0 %v1190
        %1285 = vmatpush1.msra.mxu0 %v1189
        %1286 = vmatprep.subr.mxu0 %v1188
        %1287 = vmatpush1.msra.mxu0 %v1187
        %1288 = vmatprep.subr.mxu0 %v1186
        %1289 = vmatpush1.msra.mxu0 %v1185
        %1290 = vmatprep.subr.mxu0 %v1184
        %1291 = vmatpush1.msra.mxu0 %v1183
        %1292 = vmatprep.subr.mxu0 %v1182
        %1293 = vmatpush1.msra.mxu0 %v1181
        %1294 = vmatprep.subr.mxu0 %v1180
        %1295 = vmatpush1.msra.mxu0 %v1179
        %1296 = vmatprep.subr.mxu0 %v1178
        %1297 = vmatpush1.msra.mxu0 %v1177
        %1298 = vmatprep.subr.mxu0 %v1176
        %1299 = vmatpush1.msra.mxu0 %v1175
        %1300 = vmatprep.subr.mxu0 %v1174
        %1301 = vmatpush1.msra.mxu0 %v1173
        %1302 = vmatprep.subr.mxu0 %v1172
        %1303 = vmatpush1.msra.mxu0 %v1171
        %1304 = vmatprep.subr.mxu0 %v1170
        %1305 = vmatpush1.msra.mxu0 %v1169
        %1306 = vmatprep.subr.mxu0 %v1168
        %1307 = vmatpush1.msra.mxu0 %v1167
        %1308 = vmatprep.subr.mxu0 0.0
        %1309 = vmatpush2.msra.mxu0 0.0
        %1310 = vmatprep.subr.mxu0 0.0
        %1311 = vmatpush2.msra.mxu0 0.0
        %1312 = vmatprep.subr.mxu0 0.0
        %1313 = vmatpush2.msra.mxu0 0.0
        %1314 = vmatprep.subr.mxu0 0.0
        %1315 = vmatpush2.msra.mxu0 0.0
        %1316 = vmatprep.subr.mxu0 0.0
        %1317 = vmatpush2.msra.mxu0 0.0
        %1318 = vmatprep.subr.mxu0 0.0
        %1319 = vmatpush2.msra.mxu0 0.0
        %1320 = vmatprep.subr.mxu0 0.0
        %1321 = vmatpush2.msra.mxu0 0.0
        %1322 = vmatprep.subr.mxu0 0.0
        %1323 = vmatpush2.msra.mxu0 0.0
        %1324 = vmatprep.subr.mxu0 0.0
        %1325 = vmatpush2.msra.mxu0 0.0
        %1326 = vmatprep.subr.mxu0 0.0
        %1327 = vmatpush2.msra.mxu0 0.0
        %1328 = vmatprep.subr.mxu0 0.0
        %1329 = vmatpush2.msra.mxu0 0.0
        %1330 = vmatprep.subr.mxu0 0.0
        %1331 = vmatpush2.msra.mxu0 0.0
        %1332 = vmatprep.subr.mxu0 0.0
        %1333 = vmatpush2.msra.mxu0 0.0
        %1334 = vmatprep.subr.mxu0 0.0
        %1335 = vmatpush2.msra.mxu0 0.0
        %1336 = vmatprep.subr.mxu0 0.0
        %1337 = vmatpush2.msra.mxu0 0.0
        %1338 = vmatprep.subr.mxu0 0.0
        %1339 = vmatpush2.msra.mxu0 0.0
        %1340 = vmatprep.mubr.f32.mxu0 0.0
        %1341 = vmatmul.mubr.f32.gmra.mxu0 %v1099
        %v1342 = vpop.f32.mrf.mxu0
        %v1343 = vadd.f32 %v1266, %v1342
        %v1344 = vpop.f32.mrf.mxu0
        %v1345 = vadd.f32 %v1268, %v1344
        %1346 = vmatprep.mubr.f32.mxu0 0.0
        %1347 = vmatmul.mubr.f32.gmra.mxu0 %v1102
        %v1348 = vpop.f32.mrf.mxu0
        %v1349 = vadd.f32 %v1272, %v1348
        %v1350 = vpop.f32.mrf.mxu0
        %v1351 = vadd.f32 %v1274, %v1350
        %1352 = vdwg.mxu0
        %p1353 = scmp.eq.s32.totalorder %s20, 0
        // Predicated region
        $region56: #{_feed_forward_impl.1} parent=50 // pred_check
          %p1354 = pneg %p1353
        $region57: #{_feed_forward_impl.1} parent=50 // pred_check_branch
          %1356 = sbr.rel (%p1354) target = $region59
        $region58: #{_feed_forward_impl.1} parent=50 // pred_region
          %1357 = vst [vmem:[#allocation2] sm:$0xff] %v1343
          %1358 = vst [vmem:[#allocation2 + $0x8] sm:$0xff] %v1345
          %1359 = vst [vmem:[#allocation2 + $0x10] sm:$0xff] %v1349
          %1360 = vst [vmem:[#allocation2 + $0x18] sm:$0xff] %v1351
        $region59: #{_feed_forward_impl.1} parent=50 // pred_fallthru
          _
        %p1361 = scmp.gt.s32.totalorder %s20, 0
        // Predicated region
        $region60: #{_feed_forward_impl.1} parent=50 // pred_check
          %p1362 = pneg %p1361
        $region61: #{_feed_forward_impl.1} parent=50 // pred_check_branch
          %1364 = sbr.rel (%p1362) target = $region63
        $region62: #{_feed_forward_impl.1} parent=50 // pred_region
          %v1365 = vld [vmem:[#allocation2] sm:$0xff]
          %v1366 = vld [vmem:[#allocation2 + $0x8] sm:$0xff]
          %v1367 = vld [vmem:[#allocation2 + $0x10] sm:$0xff]
          %v1368 = vld [vmem:[#allocation2 + $0x18] sm:$0xff]
          %v1369 = vadd.f32 %v1365, %v1343
          %v1370 = vadd.f32 %v1366, %v1345
          %v1371 = vadd.f32 %v1367, %v1349
          %v1372 = vadd.f32 %v1368, %v1351
          %1373 = vst [vmem:[#allocation2] sm:$0xff] %v1369
          %1374 = vst [vmem:[#allocation2 + $0x8] sm:$0xff] %v1370
          %1375 = vst [vmem:[#allocation2 + $0x10] sm:$0xff] %v1371
          %1376 = vst [vmem:[#allocation2 + $0x18] sm:$0xff] %v1372
        $region63: #{_feed_forward_impl.1} parent=50 // pred_fallthru
          _
        %p1377 = scmp.eq.s32.totalorder %s20, 1
        // Predicated region
        $region64: #{_feed_forward_impl.1} parent=50 // pred_check
          %p1378 = pneg %p1377
        $region65: #{_feed_forward_impl.1} parent=50 // pred_check_branch
          %1380 = sbr.rel (%p1378) target = $region67
        $region66: #{_feed_forward_impl.1} parent=50 // pred_region
          %v1381 = vld [vmem:[#allocation2] sm:$0xff]
          %v1382 = vld [vmem:[#allocation2 + $0x8] sm:$0xff]
          %v1383 = vld [vmem:[#allocation2 + $0x10] sm:$0xff]
          %v1384 = vld [vmem:[#allocation2 + $0x18] sm:$0xff]
          %1385 = vst [vmem:[#allocation4] sm:$0xff] %v1381
          %1386 = vst [vmem:[#allocation4 + $0x8] sm:$0xff] %v1382
          %1387 = vst [vmem:[#allocation4 + $0x10] sm:$0xff] %v1383
          %1388 = vst [vmem:[#allocation4 + $0x18] sm:$0xff] %v1384
        $region67: #{_feed_forward_impl.1} parent=50 // pred_fallthru
          _
        // Predicated region
        $region68: #{_feed_forward_impl.1} parent=50 // pred_check
          %p1389 = pneg %p123
        $region69: #{_feed_forward_impl.1} parent=50 // pred_check_branch
          %1391 = sbr.rel (%p1389) target = $region71
        $region70: #{_feed_forward_impl.1} parent=50 // pred_region
          %s1392 = smul.u32 2, %s19
          %s1394 = ssub.s32 512, 512
          %1395 = vsyncadd [#allocation5], %s1394
          %s1396 = smul.addr %s1392, 2
          %s1397 = smul.addr %s1396, 128
          %s1398 = scalar_lea.hbm %s3, %s1397
          %s1399 = sshll.u32 [#allocation4], 4
          %s1400 = int_to_ptr.vmem [resolvable:$true] %s1399
          %1405 = dma.vmem_to_hbm [thread:$0]  %s1400, 512, %s1398, [#allocation5], 256, 256, 16
        $region71: #{_feed_forward_impl.1} parent=50 // pred_fallthru
          _
        // Predicated region
        $region72: #{_feed_forward_impl.1} parent=50 // pred_check
          %p1406 = pneg %p123
        $region73: #{_feed_forward_impl.1} parent=50 // pred_check_branch
          %1408 = sbr.rel (%p1406) target = $region75
        $region74: #{_feed_forward_impl.1} parent=50 // pred_region
          %1409 = dma.done [#allocation5], 512
        $region75: #{_feed_forward_impl.1} parent=50 // pred_fallthru
          _
      $region51: #{_feed_forward_impl.1} parent=5 // pred_fallthru
        _
      %p1410 = scmp.le.s32.totalorder 2, %s10
      // Predicated region
      $region76: #{_feed_forward_impl.1} parent=5 // pred_check
        %p1411 = pneg %p1410
      $region77: #{_feed_forward_impl.1} parent=5 // pred_check_branch
        %1413 = sbr.rel (%p1411) target = $region79
      $region78: #{_feed_forward_impl.1} parent=5 // pred_region
        %s1414 = ssub.s32 %s10, 2
      $region79: #{_feed_forward_impl.1} parent=5 // pred_fallthru
        _
    $region6: #{_feed_forward_impl.1} parent=1 // loop_footer
      %s14 = sadd.s32 1, %s10
    $region7: #{_feed_forward_impl.1} parent=1 // loop_footer_branch
      %9 = sbr.rel target = $region3
    $region8: #{_feed_forward_impl.1} parent=1 // loop_exit
      _
    %1415 = vsyncpa [#allocation5], 1
    %s1416 = scalar_lea.sflag [#allocation5], 1
    %1417 = vsyncpa %s1416, 1

</llo_original>
